<compile_context>
chip_gen: v7x
topology: tpu7x:2x2x1
jax: 0.10.0
libtpu: 0.0.40
codegen_flags: <defaults>
</compile_context>

<pallas_src>
import functools

import jax
import jax.numpy as jnp
from jax.experimental import pallas as pl
from jax.experimental.pallas import tpu as pltpu


def _round_up(x, m):
    return (x + m - 1) // m * m


# ------------------------------ Pallas kernels ------------------------------ #
def _conv_stats_kernel(*refs, has_short: bool, cs: int):
    """Pass 1: contraction-dense MXU matmul per (TM, Cp) tile + per-tile partial
    BatchNorm statistics ([sum | sum-of-squares] along lanes, one ones-vector
    MXU matmul).  Optionally fuses the 1x1 projection shortcut as a second dot
    on the aligned centre-tap prefix of the taps tile already in VMEM."""
    if has_short:
        taps_ref, w_ref, ws_ref, y_ref, ysc_ref, st_ref, stsc_ref = refs
    else:
        taps_ref, w_ref, y_ref, st_ref = refs

    taps = taps_ref[...]
    y = jnp.dot(taps, w_ref[...], preferred_element_type=jnp.float32)
    y_ref[...] = y.astype(y_ref.dtype)
    ones = jnp.ones((8, y.shape[0]), jnp.float32)
    # Rows of the (8, 2*Cp) result are identical; the wrapper reads row 0.
    st_ref[0] = jnp.dot(ones, jnp.concatenate([y, y * y], axis=1),
                        preferred_element_type=jnp.float32)

    if has_short:
        ysc = jnp.dot(taps[:, :cs], ws_ref[...],
                      preferred_element_type=jnp.float32)
        ysc_ref[...] = ysc.astype(ysc_ref.dtype)
        stsc_ref[0] = jnp.dot(ones, jnp.concatenate([ysc, ysc * ysc], axis=1),
                              preferred_element_type=jnp.float32)


def _bn_apply_kernel(y_ref, scale_ref, shift_ref, *rest, relu_out: bool,
                     has_res: bool):
    """Pass 2: BN affine (+ optional residual with its own folded BN affine)
    (+ optional ReLU), lane-dense tiles, in-place on y (aliased output)."""
    out_ref = rest[-1]
    y = y_ref[...].astype(jnp.float32) * scale_ref[...] + shift_ref[...]
    if has_res:
        res_ref, rscale_ref, rshift_ref = rest[0], rest[1], rest[2]
        y = y + (res_ref[...].astype(jnp.float32) * rscale_ref[...]
                 + rshift_ref[...])
    if relu_out:
        y = jnp.maximum(y, 0.0)
    out_ref[...] = y.astype(out_ref.dtype)


# ------------------------------ tiling choice ------------------------------- #
def _pick_tiling(M):
    """Per-generation tile size / VMEM budget.  tile_m=1024 when VMEM >= 100MiB
    (v5e/v6e), 512 otherwise (v7x, 64 MiB/TC); TM is clamped so the parallel M
    axis splits into >= 2 tiles (keeps both v7x TensorCores busy)."""
    vmem_bytes = 64 << 20
    try:
        vmem_bytes = int(getattr(pltpu.get_tpu_info(), "vmem_capacity_bytes",
                                 vmem_bytes))
    except Exception:
        pass
    tile_m = 1024 if vmem_bytes >= (100 << 20) else 512
    tm = max(8, min(tile_m, _round_up(pl.cdiv(M, 2), 8)))
    mp = _round_up(M, tm)
    n_tiles = mp // tm
    vmem_limit = int(min(vmem_bytes * 3 // 4, 112 << 20))
    return tm, mp, n_tiles, vmem_limit


# ------------------------------ Pallas wrappers ------------------------------ #
def conv_stats_pallas(taps, w, *, ws=None, cs=0, tm, n_tiles, y_dtype,
                      vmem_limit):
    """taps: (Mp, KCp); w: (KCp, Cp); optional ws: (cs, Cp) (1x1 shortcut).
    Returns (y, [ysc], stats, [stats_sc]); stats are per-tile [sum | sumsq]."""
    Mp, KCp = taps.shape
    Cp = w.shape[1]
    has_short = ws is not None
    it = jnp.dtype(taps.dtype).itemsize
    it_y = jnp.dtype(y_dtype).itemsize

    inputs = [taps, w]
    in_specs = [pl.BlockSpec((tm, KCp), lambda i: (i, 0)),
                pl.BlockSpec((KCp, Cp), lambda i: (0, 0))]
    out_shape = [jax.ShapeDtypeStruct((Mp, Cp), y_dtype)]
    out_specs = [pl.BlockSpec((tm, Cp), lambda i: (i, 0))]
    if has_short:
        inputs.append(ws)
        in_specs.append(pl.BlockSpec((cs, Cp), lambda i: (0, 0)))
        out_shape.append(jax.ShapeDtypeStruct((Mp, Cp), y_dtype))
        out_specs.append(pl.BlockSpec((tm, Cp), lambda i: (i, 0)))
    out_shape.append(jax.ShapeDtypeStruct((n_tiles, 8, 2 * Cp), jnp.float32))
    out_specs.append(pl.BlockSpec((1, 8, 2 * Cp), lambda i: (i, 0, 0)))
    if has_short:
        out_shape.append(jax.ShapeDtypeStruct((n_tiles, 8, 2 * Cp), jnp.float32))
        out_specs.append(pl.BlockSpec((1, 8, 2 * Cp), lambda i: (i, 0, 0)))

    flops = 2 * Mp * KCp * Cp + 2 * 8 * Mp * 2 * Cp
    bytes_acc = (Mp * KCp + KCp * Cp) * it + Mp * Cp * it_y \
        + n_tiles * 8 * 2 * Cp * 4
    if has_short:
        flops += 2 * Mp * cs * Cp + 2 * 8 * Mp * 2 * Cp
        bytes_acc += cs * Cp * it + Mp * Cp * it_y + n_tiles * 8 * 2 * Cp * 4

    kern = functools.partial(_conv_stats_kernel, has_short=has_short, cs=cs)
    return pl.pallas_call(
        kern,
        out_shape=tuple(out_shape),
        grid=(n_tiles,),
        in_specs=in_specs,
        out_specs=tuple(out_specs),
        compiler_params=pltpu.CompilerParams(
            dimension_semantics=("parallel",), vmem_limit_bytes=vmem_limit),
        cost_estimate=pl.CostEstimate(flops=flops, transcendentals=0,
                                      bytes_accessed=bytes_acc),
    )(*inputs)


def bn_apply_pallas(y, scale, shift, *, residual=None, res_scale=None,
                    res_shift=None, relu_out, tm, n_tiles, out_dtype,
                    vmem_limit):
    """out = [relu]( y*scale + shift [+ residual*res_scale + res_shift] ),
    applied in place on y (aliased input/output when dtypes match)."""
    Mp, Cp = y.shape
    has_res = residual is not None

    inputs = [y, scale, shift]
    in_specs = [pl.BlockSpec((tm, Cp), lambda i: (i, 0)),
                pl.BlockSpec((1, Cp), lambda i: (0, 0)),
                pl.BlockSpec((1, Cp), lambda i: (0, 0))]
    if has_res:
        inputs += [residual, res_scale, res_shift]
        in_specs += [pl.BlockSpec((tm, Cp), lambda i: (i, 0)),
                     pl.BlockSpec((1, Cp), lambda i: (0, 0)),
                     pl.BlockSpec((1, Cp), lambda i: (0, 0))]

    it_y = jnp.dtype(y.dtype).itemsize
    it_o = jnp.dtype(out_dtype).itemsize
    bytes_acc = Mp * Cp * (it_y + it_o) + 2 * Cp * 4
    if has_res:
        bytes_acc += Mp * Cp * jnp.dtype(residual.dtype).itemsize + 2 * Cp * 4

    kern = functools.partial(_bn_apply_kernel, relu_out=relu_out, has_res=has_res)
    aliases = {0: 0} if jnp.dtype(y.dtype) == jnp.dtype(out_dtype) else {}
    return pl.pallas_call(
        kern,
        out_shape=jax.ShapeDtypeStruct((Mp, Cp), out_dtype),
        grid=(n_tiles,),
        in_specs=in_specs,
        out_specs=pl.BlockSpec((tm, Cp), lambda i: (i, 0)),
        input_output_aliases=aliases,
        compiler_params=pltpu.CompilerParams(
            dimension_semantics=("parallel",), vmem_limit_bytes=vmem_limit),
        cost_estimate=pl.CostEstimate(flops=(3 + 3 * int(has_res)) * Mp * Cp,
                                      transcendentals=0,
                                      bytes_accessed=bytes_acc),
    )(*inputs)


# --------------------------------- JAX glue ---------------------------------- #
def _bn_scale_shift(stats, true_m, gamma, beta, eps):
    """Per-tile partial [sum | sumsq] -> global batch mean / biased var ->
    per-channel (scale, shift) so BN(y) = y*scale + shift.  Padded rows /
    channels of y are exactly zero, so dividing by the true M keeps the
    statistics exact.  (Var via E[y^2]-E[y]^2 in f32; a Welford/mean-shifted
    combine would be safer at very large M.)"""
    cp = stats.shape[-1] // 2
    s = stats[:, 0, :].sum(axis=0)
    mean = s[:cp] / true_m
    var = jnp.maximum(s[cp:] / true_m - mean * mean, 0.0)
    g = jnp.zeros((cp,), jnp.float32).at[:gamma.size].set(
        gamma.reshape(-1).astype(jnp.float32))
    b = jnp.zeros((cp,), jnp.float32).at[:beta.size].set(
        beta.reshape(-1).astype(jnp.float32))
    scale = g * jax.lax.rsqrt(var + eps)
    shift = b - mean * scale
    return scale.reshape(1, cp), shift.reshape(1, cp)


def _tap_order(ksize):
    """Centre tap first so the fused 1x1 shortcut reads an aligned taps prefix."""
    c = ksize // 2
    return [(c, c)] + [(dy, dx) for dy in range(ksize) for dx in range(ksize)
                       if (dy, dx) != (c, c)]


def _extract_taps_folded(x_nhwc, ksize, stride, *, kc_pad, m_pad):
    """im2col with taps folded into the contraction dim, emitted directly at the
    padded (m_pad, kc_pad) shape in x's dtype (one fused XLA expression)."""
    N, H, W, C = x_nhwc.shape
    pad = (ksize - 1) // 2
    xp = jnp.pad(x_nhwc, ((0, 0), (pad, pad), (pad, pad), (0, 0)))
    Ho = (H + 2 * pad - ksize) // stride + 1
    Wo = (W + 2 * pad - ksize) // stride + 1
    M = N * Ho * Wo
    cols = []
    for dy, dx in _tap_order(ksize):
        patch = xp[:, dy:dy + stride * (Ho - 1) + 1:stride,
                      dx:dx + stride * (Wo - 1) + 1:stride, :]
        cols.append(patch.reshape(M, C))
    t = jnp.concatenate(cols, axis=1)
    return jnp.pad(t, ((0, m_pad - M), (0, kc_pad - t.shape[1])))


def _w_folded(w_oihw, *, kc_pad, c_pad, dtype):
    """PyTorch (Cout, Cin, kh, kw) -> (kc_pad, c_pad) in the same centre-first
    tap order as _extract_taps_folded, zero padded (exact-zero invariant)."""
    Cout, Cin, kh, kw = w_oihw.shape
    w_hwio = jnp.transpose(w_oihw, (2, 3, 1, 0))            # (kh, kw, Cin, Cout)
    rows = [w_hwio[dy, dx] for dy, dx in _tap_order(kh)]
    wf = jnp.concatenate(rows, axis=0)                       # (kh*kw*Cin, Cout)
    wf = jnp.pad(wf, ((0, kc_pad - wf.shape[0]), (0, c_pad - Cout)))
    return wf.astype(dtype)


def init_basic_block_params(key, in_channels, out_channels, stride):
    ks = jax.random.split(key, 6)
    p = {
        "w1": jax.random.normal(ks[0], (out_channels, in_channels, 3, 3),
                                jnp.float32) * (2.0 / (in_channels * 9)) ** 0.5,
        "g1": 1.0 + 0.1 * jax.random.normal(ks[1], (1, out_channels), jnp.float32),
        "b1": 0.1 * jax.random.normal(ks[2], (1, out_channels), jnp.float32),
        "w2": jax.random.normal(ks[3], (out_channels, out_channels, 3, 3),
                                jnp.float32) * (2.0 / (out_channels * 9)) ** 0.5,
        "g2": 1.0 + 0.1 * jax.random.normal(ks[4], (1, out_channels), jnp.float32),
        "b2": 0.1 * jax.random.normal(ks[5], (1, out_channels), jnp.float32),
    }
    if stride != 1 or in_channels != out_channels:
        ks2 = jax.random.split(ks[5], 3)
        p["ws"] = jax.random.normal(ks2[0], (out_channels, in_channels, 1, 1),
                                    jnp.float32) * (2.0 / in_channels) ** 0.5
        p["gs"] = 1.0 + 0.1 * jax.random.normal(ks2[1], (1, out_channels), jnp.float32)
        p["bs"] = 0.1 * jax.random.normal(ks2[2], (1, out_channels), jnp.float32)
    return p


def basic_block_forward(x_nchw, params, stride, *, mxu_dtype=jnp.bfloat16,
                        eps=1e-5):
    cdt = jnp.dtype(mxu_dtype)          # MXU operand + intermediate storage dtype
    x = jnp.transpose(x_nchw, (0, 2, 3, 1)).astype(cdt)      # NHWC, C -> lanes
    N, H, W, Cin = x.shape
    Cout = params["w1"].shape[0]
    has_proj = (stride != 1) or (Cin != Cout)

    H1 = (H + 2 - 3) // stride + 1
    W1 = (W + 2 - 3) // stride + 1
    M = N * H1 * W1
    Cp = _round_up(Cout, 128)
    tm, Mp, n_tiles, vmem_limit = _pick_tiling(M)

    # ---- conv1 (3x3, stride) pass 1, with the 1x1 projection shortcut fused ----
    KCp1 = _round_up(9 * Cin, 128)
    taps1 = _extract_taps_folded(x, 3, stride, kc_pad=KCp1, m_pad=Mp)
    w1 = _w_folded(params["w1"], kc_pad=KCp1, c_pad=Cp, dtype=cdt)
    if has_proj:
        cs = _round_up(Cin, 128)        # aligned taps prefix covering the centre tap
        ws = _w_folded(params["ws"], kc_pad=cs, c_pad=Cp, dtype=cdt)
        y1, ysc, st1, stsc = conv_stats_pallas(
            taps1, w1, ws=ws, cs=cs, tm=tm, n_tiles=n_tiles, y_dtype=cdt,
            vmem_limit=vmem_limit)
    else:
        y1, st1 = conv_stats_pallas(taps1, w1, tm=tm, n_tiles=n_tiles,
                                    y_dtype=cdt, vmem_limit=vmem_limit)

    # ---- bn1 + relu (pass 2, in place on y1) ----
    scale1, shift1 = _bn_scale_shift(st1, M, params["g1"], params["b1"], eps)
    out1 = bn_apply_pallas(y1, scale1, shift1, relu_out=True, tm=tm,
                           n_tiles=n_tiles, out_dtype=cdt, vmem_limit=vmem_limit)

    # ---- shortcut: raw conv output + its BN affine folded into conv2 pass 2 ----
    if has_proj:
        res = ysc                                            # (Mp, Cp), padded zeros
        rscale, rshift = _bn_scale_shift(stsc, M, params["gs"], params["bs"], eps)
    else:
        res = jnp.pad(x.reshape(M, Cin), ((0, Mp - M), (0, Cp - Cin)))
        rscale = jnp.zeros((1, Cp), jnp.float32).at[0, :Cout].set(1.0)
        rshift = jnp.zeros((1, Cp), jnp.float32)

    # ---- conv2 (3x3, stride 1) pass 1 ----
    KCp2 = _round_up(9 * Cout, 128)
    out1_nhwc = out1[:M, :Cout].reshape(N, H1, W1, Cout)
    taps2 = _extract_taps_folded(out1_nhwc, 3, 1, kc_pad=KCp2, m_pad=Mp)
    w2 = _w_folded(params["w2"], kc_pad=KCp2, c_pad=Cp, dtype=cdt)
    y2, st2 = conv_stats_pallas(taps2, w2, tm=tm, n_tiles=n_tiles, y_dtype=cdt,
                                vmem_limit=vmem_limit)

    # ---- bn2 + shortcut BN affine + residual add + relu (single pass 2) ----
    scale2, shift2 = _bn_scale_shift(st2, M, params["g2"], params["b2"], eps)
    out = bn_apply_pallas(y2, scale2, shift2, residual=res, res_scale=rscale,
                          res_shift=rshift, relu_out=True, tm=tm,
                          n_tiles=n_tiles, out_dtype=cdt, vmem_limit=vmem_limit)
    out = out[:M, :Cout].astype(jnp.float32).reshape(N, H1, W1, Cout)
    return jnp.transpose(out, (0, 3, 1, 2))                  # NCHW


# ------------------------- pure-JAX reference (check) ------------------------- #
def _ref_conv(x, w, stride, pad):
    return jax.lax.conv_general_dilated(
        x, w, (stride, stride), ((pad, pad), (pad, pad)),
        dimension_numbers=("NCHW", "OIHW", "NCHW"))


def _ref_bn(y, g, b, eps=1e-5):
    mean = y.mean(axis=(0, 2, 3), keepdims=True)
    var = jnp.square(y - mean).mean(axis=(0, 2, 3), keepdims=True)
    C = y.shape[1]
    return (y - mean) * jax.lax.rsqrt(var + eps) * g.reshape(1, C, 1, 1) \
        + b.reshape(1, C, 1, 1)


def basic_block_reference(x, p, stride):
    Cin, Cout = x.shape[1], p["w1"].shape[0]
    out = jax.nn.relu(_ref_bn(_ref_conv(x, p["w1"], stride, 1), p["g1"], p["b1"]))
    out = _ref_bn(_ref_conv(out, p["w2"], 1, 1), p["g2"], p["b2"])
    if stride != 1 or Cin != Cout:
        sc = _ref_bn(_ref_conv(x, p["ws"], stride, 0), p["gs"], p["bs"])
    else:
        sc = x
    return jax.nn.relu(out + sc)


# ----------------------------------- main ------------------------------------ #
if __name__ == "__main__":
    key = jax.random.PRNGKey(0)
    kx, kp1, kp2 = jax.random.split(key, 3)
    x = jax.random.normal(kx, (2, 4, 16, 16), jnp.float32)   # NCHW, like PyTorch

    fwd = jax.jit(basic_block_forward, static_argnames=("stride", "mxu_dtype"))

    cases = [(4, 8, 2, kp1),   # projection shortcut (stride 2, 4 -> 8)
             (4, 4, 1, kp2)]   # identity shortcut   (stride 1, 4 -> 4)
    for cin, cout, stride, kp in cases:
        p = init_basic_block_params(kp, cin, cout, stride)
        r = basic_block_reference(x, p, stride)

        # f32-operand / f32-intermediate path: tight numerical check.
        y32 = fwd(x, p, stride=stride, mxu_dtype=jnp.float32)
        jax.block_until_ready(y32)
        assert y32.shape == r.shape
        assert jnp.allclose(y32, r, rtol=2e-3, atol=2e-3), \
            float(jnp.max(jnp.abs(y32 - r)))

        # bf16-operand / bf16-intermediate path (default perf config); loose
        # tolerance covers bf16 rounding, f32 accumulation / stats kept.
        ybf = fwd(x, p, stride=stride, mxu_dtype=jnp.bfloat16)
        jax.block_until_ready(ybf)
        assert ybf.shape == r.shape
        assert jnp.allclose(ybf, r, rtol=1e-1, atol=1e-1), \
            float(jnp.max(jnp.abs(ybf - r)))

    print("KERNEL_OK")
</pallas_src>

<mosaic_0001>
module attributes {stable_mosaic.version = 11 : i64} {
  func.func @_conv_stats_kernel(%arg0: i32, %arg1: memref<64x128xf32, #tpu.memory_space<vmem>>, %arg2: memref<128x128xf32, #tpu.memory_space<vmem>>, %arg3: memref<128x128xf32, #tpu.memory_space<vmem>>, %arg4: memref<64x128xf32, #tpu.memory_space<vmem>>, %arg5: memref<64x128xf32, #tpu.memory_space<vmem>>, %arg6: memref<1x8x256xf32, #tpu.memory_space<vmem>>, %arg7: memref<1x8x256xf32, #tpu.memory_space<vmem>>) attributes {dimension_semantics = [#tpu.dimension_semantics<parallel>], iteration_bounds = array<i64: 2>, scalar_prefetch = 0 : i64, scratch_operands = 0 : i64, tpu.core_type = #tpu.core_type<tc>, window_params = [{transform_indices = @transform_0, window_bounds = array<i64: 64, 128>}, {pipeline_mode = #tpu.pipeline_mode<synchronous>, transform_indices = @transform_1, window_bounds = array<i64: 128, 128>}, {pipeline_mode = #tpu.pipeline_mode<synchronous>, transform_indices = @transform_2, window_bounds = array<i64: 128, 128>}, {transform_indices = @transform_3, window_bounds = array<i64: 64, 128>}, {transform_indices = @transform_4, window_bounds = array<i64: 64, 128>}, {transform_indices = @transform_5, window_bounds = array<i64: 1, 8, 256>}, {transform_indices = @transform_6, window_bounds = array<i64: 1, 8, 256>}]} {
    %c0 = arith.constant 0 : index
    %c0_0 = arith.constant 0 : index
    %0 = vector.load %arg1[%c0, %c0_0] : memref<64x128xf32, #tpu.memory_space<vmem>>, vector<64x128xf32>
    %c0_1 = arith.constant 0 : index
    %c0_2 = arith.constant 0 : index
    %1 = vector.load %arg2[%c0_1, %c0_2] : memref<128x128xf32, #tpu.memory_space<vmem>>, vector<128x128xf32>
    %cst = arith.constant dense<0.000000e+00> : vector<64x128xf32>
    %2 = tpu.matmul %0, %1, %cst {dimension_numbers = #tpu.dot_dimension_numbers<[1], [0], [0], [1], [0, 0, 1, 1], [], []>} : vector<64x128xf32>, vector<128x128xf32>, vector<64x128xf32> -> vector<64x128xf32>
    %c0_3 = arith.constant 0 : index
    %c0_4 = arith.constant 0 : index
    %3 = vector.load %arg4[%c0_3, %c0_4] : memref<64x128xf32, #tpu.memory_space<vmem>>, vector<64x128xf32>
    tpu.vector_store %arg4[%c0_3, %c0_4], %2 {strides = array<i32>} : memref<64x128xf32, #tpu.memory_space<vmem>>, vector<64x128xf32>,
    %cst_5 = arith.constant 1.000000e+00 : f32
    %4 = vector.broadcast %cst_5 : f32 to vector<8x64xf32>
    %5 = arith.mulf %2, %2 : vector<64x128xf32>
    %6 = tpu.concatenate %2, %5 in 1 : vector<64x128xf32>, vector<64x128xf32> -> vector<64x256xf32>
    %cst_6 = arith.constant dense<0.000000e+00> : vector<8x256xf32>
    %7 = tpu.matmul %4, %6, %cst_6 {dimension_numbers = #tpu.dot_dimension_numbers<[1], [0], [0], [1], [0, 0, 1, 1], [], []>} : vector<8x64xf32>, vector<64x256xf32>, vector<8x256xf32> -> vector<8x256xf32>
    %c0_7 = arith.constant 0 : index
    %c0_8 = arith.constant 0 : index
    %c0_9 = arith.constant 0 : index
    %8 = vector.load %arg6[%c0_7, %c0_8, %c0_9] : memref<1x8x256xf32, #tpu.memory_space<vmem>>, vector<1x8x256xf32>
    %9 = vector.shape_cast %8 : vector<1x8x256xf32> to vector<8x256xf32>
    %10 = vector.shape_cast %7 : vector<8x256xf32> to vector<1x8x256xf32>
    tpu.vector_store %arg6[%c0_7, %c0_8, %c0_9], %10 {strides = array<i32>} : memref<1x8x256xf32, #tpu.memory_space<vmem>>, vector<1x8x256xf32>,
    %c0_10 = arith.constant 0 : index
    %c0_11 = arith.constant 0 : index
    %11 = vector.load %arg3[%c0_10, %c0_11] : memref<128x128xf32, #tpu.memory_space<vmem>>, vector<128x128xf32>
    %cst_12 = arith.constant dense<0.000000e+00> : vector<64x128xf32>
    %12 = tpu.matmul %0, %11, %cst_12 {dimension_numbers = #tpu.dot_dimension_numbers<[1], [0], [0], [1], [0, 0, 1, 1], [], []>} : vector<64x128xf32>, vector<128x128xf32>, vector<64x128xf32> -> vector<64x128xf32>
    %c0_13 = arith.constant 0 : index
    %c0_14 = arith.constant 0 : index
    %13 = vector.load %arg5[%c0_13, %c0_14] : memref<64x128xf32, #tpu.memory_space<vmem>>, vector<64x128xf32>
    tpu.vector_store %arg5[%c0_13, %c0_14], %12 {strides = array<i32>} : memref<64x128xf32, #tpu.memory_space<vmem>>, vector<64x128xf32>,
    %14 = arith.mulf %12, %12 : vector<64x128xf32>
    %15 = tpu.concatenate %12, %14 in 1 : vector<64x128xf32>, vector<64x128xf32> -> vector<64x256xf32>
    %cst_15 = arith.constant dense<0.000000e+00> : vector<8x256xf32>
    %16 = tpu.matmul %4, %15, %cst_15 {dimension_numbers = #tpu.dot_dimension_numbers<[1], [0], [0], [1], [0, 0, 1, 1], [], []>} : vector<8x64xf32>, vector<64x256xf32>, vector<8x256xf32> -> vector<8x256xf32>
    %c0_16 = arith.constant 0 : index
    %c0_17 = arith.constant 0 : index
    %c0_18 = arith.constant 0 : index
    %17 = vector.load %arg7[%c0_16, %c0_17, %c0_18] : memref<1x8x256xf32, #tpu.memory_space<vmem>>, vector<1x8x256xf32>
    %18 = vector.shape_cast %17 : vector<1x8x256xf32> to vector<8x256xf32>
    %19 = vector.shape_cast %16 : vector<8x256xf32> to vector<1x8x256xf32>
    tpu.vector_store %arg7[%c0_16, %c0_17, %c0_18], %19 {strides = array<i32>} : memref<1x8x256xf32, #tpu.memory_space<vmem>>, vector<1x8x256xf32>,
    return
  }
  func.func @transform_0(%arg0: i32) -> (i32, i32) {
    %c0_i32 = arith.constant 0 : i32
    %c0_i32_0 = arith.constant 0 : i32
    return %arg0, %c0_i32 : i32, i32
  }
  func.func @transform_1(%arg0: i32) -> (i32, i32) {
    %c0_i32 = arith.constant 0 : i32
    %c0_i32_0 = arith.constant 0 : i32
    %c0_i32_1 = arith.constant 0 : i32
    return %c0_i32, %c0_i32_0 : i32, i32
  }
  func.func @transform_2(%arg0: i32) -> (i32, i32) {
    %c0_i32 = arith.constant 0 : i32
    %c0_i32_0 = arith.constant 0 : i32
    %c0_i32_1 = arith.constant 0 : i32
    return %c0_i32, %c0_i32_0 : i32, i32
  }
  func.func @transform_3(%arg0: i32) -> (i32, i32) {
    %c0_i32 = arith.constant 0 : i32
    %c0_i32_0 = arith.constant 0 : i32
    return %arg0, %c0_i32 : i32, i32
  }
  func.func @transform_4(%arg0: i32) -> (i32, i32) {
    %c0_i32 = arith.constant 0 : i32
    %c0_i32_0 = arith.constant 0 : i32
    return %arg0, %c0_i32 : i32, i32
  }
  func.func @transform_5(%arg0: i32) -> (i32, i32, i32) {
    %c0_i32 = arith.constant 0 : i32
    %c0_i32_0 = arith.constant 0 : i32
    %c0_i32_1 = arith.constant 0 : i32
    return %arg0, %c0_i32, %c0_i32_0 : i32, i32, i32
  }
  func.func @transform_6(%arg0: i32) -> (i32, i32, i32) {
    %c0_i32 = arith.constant 0 : i32
    %c0_i32_0 = arith.constant 0 : i32
    %c0_i32_1 = arith.constant 0 : i32
    return %arg0, %c0_i32, %c0_i32_0 : i32, i32, i32
  }
}

module attributes {stable_mosaic.version = 11 : i64} {
  func.func @_bn_apply_kernel(%arg0: i32, %arg1: memref<64x128xf32, #tpu.memory_space<vmem>>, %arg2: memref<1x128xf32, #tpu.memory_space<vmem>>, %arg3: memref<1x128xf32, #tpu.memory_space<vmem>>, %arg4: memref<64x128xf32, #tpu.memory_space<vmem>>) attributes {dimension_semantics = [#tpu.dimension_semantics<parallel>], iteration_bounds = array<i64: 2>, scalar_prefetch = 0 : i64, scratch_operands = 0 : i64, tpu.core_type = #tpu.core_type<tc>, window_params = [{transform_indices = @transform_0, window_bounds = array<i64: 64, 128>}, {pipeline_mode = #tpu.pipeline_mode<synchronous>, transform_indices = @transform_1, window_bounds = array<i64: 1, 128>}, {pipeline_mode = #tpu.pipeline_mode<synchronous>, transform_indices = @transform_2, window_bounds = array<i64: 1, 128>}, {transform_indices = @transform_3, window_bounds = array<i64: 64, 128>}]} {
    %c0 = arith.constant 0 : index
    %c0_0 = arith.constant 0 : index
    %0 = vector.load %arg1[%c0, %c0_0] : memref<64x128xf32, #tpu.memory_space<vmem>>, vector<64x128xf32>
    %c0_1 = arith.constant 0 : index
    %c0_2 = arith.constant 0 : index
    %1 = vector.load %arg2[%c0_1, %c0_2] : memref<1x128xf32, #tpu.memory_space<vmem>>, vector<1x128xf32>
    %2 = vector.broadcast %1 : vector<1x128xf32> to vector<64x128xf32>
    %3 = arith.mulf %0, %2 : vector<64x128xf32>
    %c0_3 = arith.constant 0 : index
    %c0_4 = arith.constant 0 : index
    %4 = vector.load %arg3[%c0_3, %c0_4] : memref<1x128xf32, #tpu.memory_space<vmem>>, vector<1x128xf32>
    %5 = vector.broadcast %4 : vector<1x128xf32> to vector<64x128xf32>
    %6 = arith.addf %3, %5 : vector<64x128xf32>
    %cst = arith.constant 0.000000e+00 : f32
    %7 = vector.broadcast %cst : f32 to vector<64x128xf32>
    %8 = arith.maximumf %6, %7 : vector<64x128xf32>
    %c0_5 = arith.constant 0 : index
    %c0_6 = arith.constant 0 : index
    %9 = vector.load %arg4[%c0_5, %c0_6] : memref<64x128xf32, #tpu.memory_space<vmem>>, vector<64x128xf32>
    tpu.vector_store %arg4[%c0_5, %c0_6], %8 {strides = array<i32>} : memref<64x128xf32, #tpu.memory_space<vmem>>, vector<64x128xf32>,
    return
  }
  func.func @transform_0(%arg0: i32) -> (i32, i32) {
    %c0_i32 = arith.constant 0 : i32
    %c0_i32_0 = arith.constant 0 : i32
    return %arg0, %c0_i32 : i32, i32
  }
  func.func @transform_1(%arg0: i32) -> (i32, i32) {
    %c0_i32 = arith.constant 0 : i32
    %c0_i32_0 = arith.constant 0 : i32
    %c0_i32_1 = arith.constant 0 : i32
    return %c0_i32, %c0_i32_0 : i32, i32
  }
  func.func @transform_2(%arg0: i32) -> (i32, i32) {
    %c0_i32 = arith.constant 0 : i32
    %c0_i32_0 = arith.constant 0 : i32
    %c0_i32_1 = arith.constant 0 : i32
    return %c0_i32, %c0_i32_0 : i32, i32
  }
  func.func @transform_3(%arg0: i32) -> (i32, i32) {
    %c0_i32 = arith.constant 0 : i32
    %c0_i32_0 = arith.constant 0 : i32
    return %arg0, %c0_i32 : i32, i32
  }
}

module attributes {stable_mosaic.version = 11 : i64} {
  func.func @_conv_stats_kernel(%arg0: i32, %arg1: memref<64x128xf32, #tpu.memory_space<vmem>>, %arg2: memref<128x128xf32, #tpu.memory_space<vmem>>, %arg3: memref<64x128xf32, #tpu.memory_space<vmem>>, %arg4: memref<1x8x256xf32, #tpu.memory_space<vmem>>) attributes {dimension_semantics = [#tpu.dimension_semantics<parallel>], iteration_bounds = array<i64: 2>, scalar_prefetch = 0 : i64, scratch_operands = 0 : i64, tpu.core_type = #tpu.core_type<tc>, window_params = [{transform_indices = @transform_0, window_bounds = array<i64: 64, 128>}, {pipeline_mode = #tpu.pipeline_mode<synchronous>, transform_indices = @transform_1, window_bounds = array<i64: 128, 128>}, {transform_indices = @transform_2, window_bounds = array<i64: 64, 128>}, {transform_indices = @transform_3, window_bounds = array<i64: 1, 8, 256>}]} {
    %c0 = arith.constant 0 : index
    %c0_0 = arith.constant 0 : index
    %0 = vector.load %arg1[%c0, %c0_0] : memref<64x128xf32, #tpu.memory_space<vmem>>, vector<64x128xf32>
    %c0_1 = arith.constant 0 : index
    %c0_2 = arith.constant 0 : index
    %1 = vector.load %arg2[%c0_1, %c0_2] : memref<128x128xf32, #tpu.memory_space<vmem>>, vector<128x128xf32>
    %cst = arith.constant dense<0.000000e+00> : vector<64x128xf32>
    %2 = tpu.matmul %0, %1, %cst {dimension_numbers = #tpu.dot_dimension_numbers<[1], [0], [0], [1], [0, 0, 1, 1], [], []>} : vector<64x128xf32>, vector<128x128xf32>, vector<64x128xf32> -> vector<64x128xf32>
    %c0_3 = arith.constant 0 : index
    %c0_4 = arith.constant 0 : index
    %3 = vector.load %arg3[%c0_3, %c0_4] : memref<64x128xf32, #tpu.memory_space<vmem>>, vector<64x128xf32>
    tpu.vector_store %arg3[%c0_3, %c0_4], %2 {strides = array<i32>} : memref<64x128xf32, #tpu.memory_space<vmem>>, vector<64x128xf32>,
    %cst_5 = arith.constant 1.000000e+00 : f32
    %4 = vector.broadcast %cst_5 : f32 to vector<8x64xf32>
    %5 = arith.mulf %2, %2 : vector<64x128xf32>
    %6 = tpu.concatenate %2, %5 in 1 : vector<64x128xf32>, vector<64x128xf32> -> vector<64x256xf32>
    %cst_6 = arith.constant dense<0.000000e+00> : vector<8x256xf32>
    %7 = tpu.matmul %4, %6, %cst_6 {dimension_numbers = #tpu.dot_dimension_numbers<[1], [0], [0], [1], [0, 0, 1, 1], [], []>} : vector<8x64xf32>, vector<64x256xf32>, vector<8x256xf32> -> vector<8x256xf32>
    %c0_7 = arith.constant 0 : index
    %c0_8 = arith.constant 0 : index
    %c0_9 = arith.constant 0 : index
    %8 = vector.load %arg4[%c0_7, %c0_8, %c0_9] : memref<1x8x256xf32, #tpu.memory_space<vmem>>, vector<1x8x256xf32>
    %9 = vector.shape_cast %8 : vector<1x8x256xf32> to vector<8x256xf32>
    %10 = vector.shape_cast %7 : vector<8x256xf32> to vector<1x8x256xf32>
    tpu.vector_store %arg4[%c0_7, %c0_8, %c0_9], %10 {strides = array<i32>} : memref<1x8x256xf32, #tpu.memory_space<vmem>>, vector<1x8x256xf32>,
    return
  }
  func.func @transform_0(%arg0: i32) -> (i32, i32) {
    %c0_i32 = arith.constant 0 : i32
    %c0_i32_0 = arith.constant 0 : i32
    return %arg0, %c0_i32 : i32, i32
  }
  func.func @transform_1(%arg0: i32) -> (i32, i32) {
    %c0_i32 = arith.constant 0 : i32
    %c0_i32_0 = arith.constant 0 : i32
    %c0_i32_1 = arith.constant 0 : i32
    return %c0_i32, %c0_i32_0 : i32, i32
  }
  func.func @transform_2(%arg0: i32) -> (i32, i32) {
    %c0_i32 = arith.constant 0 : i32
    %c0_i32_0 = arith.constant 0 : i32
    return %arg0, %c0_i32 : i32, i32
  }
  func.func @transform_3(%arg0: i32) -> (i32, i32, i32) {
    %c0_i32 = arith.constant 0 : i32
    %c0_i32_0 = arith.constant 0 : i32
    %c0_i32_1 = arith.constant 0 : i32
    return %arg0, %c0_i32, %c0_i32_0 : i32, i32, i32
  }
}

module attributes {stable_mosaic.version = 11 : i64} {
  func.func @_bn_apply_kernel(%arg0: i32, %arg1: memref<64x128xf32, #tpu.memory_space<vmem>>, %arg2: memref<1x128xf32, #tpu.memory_space<vmem>>, %arg3: memref<1x128xf32, #tpu.memory_space<vmem>>, %arg4: memref<64x128xf32, #tpu.memory_space<vmem>>, %arg5: memref<1x128xf32, #tpu.memory_space<vmem>>, %arg6: memref<1x128xf32, #tpu.memory_space<vmem>>, %arg7: memref<64x128xf32, #tpu.memory_space<vmem>>) attributes {dimension_semantics = [#tpu.dimension_semantics<parallel>], iteration_bounds = array<i64: 2>, scalar_prefetch = 0 : i64, scratch_operands = 0 : i64, tpu.core_type = #tpu.core_type<tc>, window_params = [{transform_indices = @transform_0, window_bounds = array<i64: 64, 128>}, {pipeline_mode = #tpu.pipeline_mode<synchronous>, transform_indices = @transform_1, window_bounds = array<i64: 1, 128>}, {pipeline_mode = #tpu.pipeline_mode<synchronous>, transform_indices = @transform_2, window_bounds = array<i64: 1, 128>}, {transform_indices = @transform_3, window_bounds = array<i64: 64, 128>}, {pipeline_mode = #tpu.pipeline_mode<synchronous>, transform_indices = @transform_4, window_bounds = array<i64: 1, 128>}, {pipeline_mode = #tpu.pipeline_mode<synchronous>, transform_indices = @transform_5, window_bounds = array<i64: 1, 128>}, {transform_indices = @transform_6, window_bounds = array<i64: 64, 128>}]} {
    %c0 = arith.constant 0 : index
    %c0_0 = arith.constant 0 : index
    %0 = vector.load %arg1[%c0, %c0_0] : memref<64x128xf32, #tpu.memory_space<vmem>>, vector<64x128xf32>
    %c0_1 = arith.constant 0 : index
    %c0_2 = arith.constant 0 : index
    %1 = vector.load %arg2[%c0_1, %c0_2] : memref<1x128xf32, #tpu.memory_space<vmem>>, vector<1x128xf32>
    %2 = vector.broadcast %1 : vector<1x128xf32> to vector<64x128xf32>
    %3 = arith.mulf %0, %2 : vector<64x128xf32>
    %c0_3 = arith.constant 0 : index
    %c0_4 = arith.constant 0 : index
    %4 = vector.load %arg3[%c0_3, %c0_4] : memref<1x128xf32, #tpu.memory_space<vmem>>, vector<1x128xf32>
    %5 = vector.broadcast %4 : vector<1x128xf32> to vector<64x128xf32>
    %6 = arith.addf %3, %5 : vector<64x128xf32>
    %c0_5 = arith.constant 0 : index
    %c0_6 = arith.constant 0 : index
    %7 = vector.load %arg4[%c0_5, %c0_6] : memref<64x128xf32, #tpu.memory_space<vmem>>, vector<64x128xf32>
    %c0_7 = arith.constant 0 : index
    %c0_8 = arith.constant 0 : index
    %8 = vector.load %arg5[%c0_7, %c0_8] : memref<1x128xf32, #tpu.memory_space<vmem>>, vector<1x128xf32>
    %9 = vector.broadcast %8 : vector<1x128xf32> to vector<64x128xf32>
    %10 = arith.mulf %7, %9 : vector<64x128xf32>
    %c0_9 = arith.constant 0 : index
    %c0_10 = arith.constant 0 : index
    %11 = vector.load %arg6[%c0_9, %c0_10] : memref<1x128xf32, #tpu.memory_space<vmem>>, vector<1x128xf32>
    %12 = vector.broadcast %11 : vector<1x128xf32> to vector<64x128xf32>
    %13 = arith.addf %10, %12 : vector<64x128xf32>
    %14 = arith.addf %6, %13 : vector<64x128xf32>
    %cst = arith.constant 0.000000e+00 : f32
    %15 = vector.broadcast %cst : f32 to vector<64x128xf32>
    %16 = arith.maximumf %14, %15 : vector<64x128xf32>
    %c0_11 = arith.constant 0 : index
    %c0_12 = arith.constant 0 : index
    %17 = vector.load %arg7[%c0_11, %c0_12] : memref<64x128xf32, #tpu.memory_space<vmem>>, vector<64x128xf32>
    tpu.vector_store %arg7[%c0_11, %c0_12], %16 {strides = array<i32>} : memref<64x128xf32, #tpu.memory_space<vmem>>, vector<64x128xf32>,
    return
  }
  func.func @transform_0(%arg0: i32) -> (i32, i32) {
    %c0_i32 = arith.constant 0 : i32
    %c0_i32_0 = arith.constant 0 : i32
    return %arg0, %c0_i32 : i32, i32
  }
  func.func @transform_1(%arg0: i32) -> (i32, i32) {
    %c0_i32 = arith.constant 0 : i32
    %c0_i32_0 = arith.constant 0 : i32
    %c0_i32_1 = arith.constant 0 : i32
    return %c0_i32, %c0_i32_0 : i32, i32
  }
  func.func @transform_2(%arg0: i32) -> (i32, i32) {
    %c0_i32 = arith.constant 0 : i32
    %c0_i32_0 = arith.constant 0 : i32
    %c0_i32_1 = arith.constant 0 : i32
    return %c0_i32, %c0_i32_0 : i32, i32
  }
  func.func @transform_3(%arg0: i32) -> (i32, i32) {
    %c0_i32 = arith.constant 0 : i32
    %c0_i32_0 = arith.constant 0 : i32
    return %arg0, %c0_i32 : i32, i32
  }
  func.func @transform_4(%arg0: i32) -> (i32, i32) {
    %c0_i32 = arith.constant 0 : i32
    %c0_i32_0 = arith.constant 0 : i32
    %c0_i32_1 = arith.constant 0 : i32
    return %c0_i32, %c0_i32_0 : i32, i32
  }
  func.func @transform_5(%arg0: i32) -> (i32, i32) {
    %c0_i32 = arith.constant 0 : i32
    %c0_i32_0 = arith.constant 0 : i32
    %c0_i32_1 = arith.constant 0 : i32
    return %c0_i32, %c0_i32_0 : i32, i32
  }
  func.func @transform_6(%arg0: i32) -> (i32, i32) {
    %c0_i32 = arith.constant 0 : i32
    %c0_i32_0 = arith.constant 0 : i32
    return %arg0, %c0_i32 : i32, i32
  }
}

</mosaic_0001>

<llo_original>
// kernel: basic_block_forward.5
$region0: #{basic_block_forward.5}
  #allocation0 [shape = 'u32[]', space=smem, size = 0x4, offset = 0x4, fixed_abs, tag = 'smem constant byte address 0x4 - core index']
  #allocation1 [shape = 'u32[144,128]{1,0:T(1,128)}', space=vmem, size = 0x12000, scoped, tag = 'internal scratch']
  %s0 = inlined_call_operand.vmem [shape: f32[128,128], index: 0, kind: input, shape index: {}, may-alias: {0,3}]
  %s1 = inlined_call_operand.vmem [shape: f32[1,128], index: 1, kind: input, shape index: {}]
  %s2 = inlined_call_operand.vmem [shape: f32[1,128], index: 2, kind: input, shape index: {}]
  %s3 = inlined_call_operand.vmem [shape: f32[128,128], index: 3, kind: output, shape index: {}, may-alias: {0,3}]
  %s4 = sld [smem:[#allocation0]]
  $region45: #{basic_block_forward.5} parent=0
    _
  %s6 = ssub.s32 1, %s4
  %s7 = scalar_select 0, %s6, %s4
  loop: start=0, step=1, limit=4
  $region2: #{basic_block_forward.5} parent=0 // loop_pre_header
    _
  $region3: #{basic_block_forward.5} parent=0 // loop_header
    %s9 = sphi 0, %s13
    %p10 = scmp.ge.s32.totalorder %s9, 4
    %s19 = sphi 0, %s21
    %s22 = sphi 0, %s19
    %s23 = sphi 0, %s22
    %s39 = sphi 0, %s23
    %s43 = sphi 0, %s43
    %s45 = sphi 0, %s43
    %s46 = sphi 0, %s45
    %s60 = sphi 0, %s46
    %s64 = sphi 0, %s64
    %s66 = sphi 0, %s64
    %s67 = sphi 0, %s66
    %s81 = sphi 0, %s67
    %s87 = sphi 0, %s89
    %s90 = sphi 0, %s87
    %s91 = sphi 0, %s90
    %s107 = sphi 0, %s91
  $region4: #{basic_block_forward.5} parent=0 // loop_header_branch
    %12 = sbr.rel (%p10) target = $region8
  $region5: #{basic_block_forward.5} parent=0 // loop_body
    %s14 = ssub.s32 %s9, 1
    %s15 = ssub.s32 %s9, 2
    %s16 = sadd.s32 %s9, 1
    %s17 = ssub.s32 %s9, %s16
    %p18 = scmp.eq.s32.totalorder %s17, 0
    %s20 = sadd.s32 %s19, 1
    %s21 = scalar_select %p18, %s19, %s20
    %p24 = pneg %p18
    %p25 = scmp.eq.s32.totalorder %s9, 1
    %p26 = por %p24, %p25
    %p27 = scmp.ne.s32.totalorder %s19, %s22
    %p28 = scmp.eq.s32.totalorder %s9, 0
    %p29 = por %p27, %p28
    %p30 = scmp.ne.s32.totalorder %s19, %s22
    %p31 = scmp.eq.s32.totalorder %s14, 1
    %p32 = por %p30, %p31
    %p33 = scmp.ne.s32.totalorder %s22, %s23
    %p34 = scmp.eq.s32.totalorder %s14, 0
    %p35 = por %p33, %p34
    %p36 = scmp.ne.s32.totalorder %s22, %s23
    %p37 = scmp.eq.s32.totalorder %s15, 1
    %p38 = por %p36, %p37
    %p40 = scmp.ne.s32.totalorder %s23, %s39
    %p41 = scmp.eq.s32.totalorder %s15, 0
    %p42 = por %p40, %p41
    %s44 = sadd.s32 %s43, 1
    %p47 = scmp.eq.s32.totalorder %s9, 1
    %p48 = scmp.ne.s32.totalorder %s43, %s45
    %p49 = scmp.eq.s32.totalorder %s9, 0
    %p50 = por %p48, %p49
    %p51 = scmp.ne.s32.totalorder %s43, %s45
    %p52 = scmp.eq.s32.totalorder %s14, 1
    %p53 = por %p51, %p52
    %p54 = scmp.ne.s32.totalorder %s45, %s46
    %p55 = scmp.eq.s32.totalorder %s14, 0
    %p56 = por %p54, %p55
    %p57 = scmp.ne.s32.totalorder %s45, %s46
    %p58 = scmp.eq.s32.totalorder %s15, 1
    %p59 = por %p57, %p58
    %p61 = scmp.ne.s32.totalorder %s46, %s60
    %p62 = scmp.eq.s32.totalorder %s15, 0
    %p63 = por %p61, %p62
    %s65 = sadd.s32 %s64, 1
    %p68 = scmp.eq.s32.totalorder %s9, 1
    %p69 = scmp.ne.s32.totalorder %s64, %s66
    %p70 = scmp.eq.s32.totalorder %s9, 0
    %p71 = por %p69, %p70
    %p72 = scmp.ne.s32.totalorder %s64, %s66
    %p73 = scmp.eq.s32.totalorder %s14, 1
    %p74 = por %p72, %p73
    %p75 = scmp.ne.s32.totalorder %s66, %s67
    %p76 = scmp.eq.s32.totalorder %s14, 0
    %p77 = por %p75, %p76
    %p78 = scmp.ne.s32.totalorder %s66, %s67
    %p79 = scmp.eq.s32.totalorder %s15, 1
    %p80 = por %p78, %p79
    %p82 = scmp.ne.s32.totalorder %s67, %s81
    %p83 = scmp.eq.s32.totalorder %s15, 0
    %p84 = por %p82, %p83
    %s85 = ssub.s32 %s9, %s16
    %p86 = scmp.eq.s32.totalorder %s85, 0
    %s88 = sadd.s32 %s87, 1
    %s89 = scalar_select %p86, %s87, %s88
    %p92 = pneg %p86
    %p93 = scmp.eq.s32.totalorder %s9, 1
    %p94 = por %p92, %p93
    %p95 = scmp.ne.s32.totalorder %s87, %s90
    %p96 = scmp.eq.s32.totalorder %s9, 0
    %p97 = por %p95, %p96
    %p98 = scmp.ne.s32.totalorder %s87, %s90
    %p99 = scmp.eq.s32.totalorder %s14, 1
    %p100 = por %p98, %p99
    %p101 = scmp.ne.s32.totalorder %s90, %s91
    %p102 = scmp.eq.s32.totalorder %s14, 0
    %p103 = por %p101, %p102
    %p104 = scmp.ne.s32.totalorder %s90, %s91
    %p105 = scmp.eq.s32.totalorder %s15, 1
    %p106 = por %p104, %p105
    %p108 = scmp.ne.s32.totalorder %s91, %s107
    %p109 = scmp.eq.s32.totalorder %s15, 0
    %p110 = por %p108, %p109
    %p111 = scmp.le.s32.totalorder 1, %s9
    %p112 = scmp.lt.s32.totalorder %s9, 3
    %p113 = pnand %p111, %p112
    %p114 = pneg %p113
    // Predicated region
    $region9: #{basic_block_forward.5} parent=5 // pred_check
      _
    $region10: #{basic_block_forward.5} parent=5 // pred_check_branch
      %116 = sbr.rel (%p113) target = $region12
    $region11: #{basic_block_forward.5} parent=5 // pred_region
      %s117 = ssub.s32 %s9, 1
      // Predicated region
      $region13: #{basic_block_forward.5} parent=11 // pred_check
        %p118 = pneg %p56
      $region14: #{basic_block_forward.5} parent=11 // pred_check_branch
        %120 = sbr.rel (%p118) target = $region16
      $region15: #{basic_block_forward.5} parent=11 // pred_region
        _
      $region16: #{basic_block_forward.5} parent=11 // pred_fallthru
        _
      // Predicated region
      $region17: #{basic_block_forward.5} parent=11 // pred_check
        %p121 = pneg %p77
      $region18: #{basic_block_forward.5} parent=11 // pred_check_branch
        %123 = sbr.rel (%p121) target = $region20
      $region19: #{basic_block_forward.5} parent=11 // pred_region
        _
      $region20: #{basic_block_forward.5} parent=11 // pred_fallthru
        _
    $region12: #{basic_block_forward.5} parent=5 // pred_fallthru
      _
    %p124 = scmp.lt.s32.totalorder %s9, 2
    // Predicated region
    $region21: #{basic_block_forward.5} parent=5 // pred_check
      %p125 = pneg %p124
    $region22: #{basic_block_forward.5} parent=5 // pred_check_branch
      %127 = sbr.rel (%p125) target = $region24
    $region23: #{basic_block_forward.5} parent=5 // pred_region
      // Predicated region
      $region25: #{basic_block_forward.5} parent=23 // pred_check
        %p128 = pneg %p29
      $region26: #{basic_block_forward.5} parent=23 // pred_check_branch
        %130 = sbr.rel (%p128) target = $region28
      $region27: #{basic_block_forward.5} parent=23 // pred_region
        %s131 = smul.u32 8, %s9
        %p132 = scmp.lt.s32.totalorder %s131, 15
        %s133 = scalar_select %p132, %s131, 15
        %s134 = smul.addr %s133, 8
        %s135 = scalar_lea.vmem %s0, %s134
        %s136 = smul.u32 8, %s9
      $region28: #{basic_block_forward.5} parent=23 // pred_fallthru
        _
    $region24: #{basic_block_forward.5} parent=5 // pred_fallthru
      _
    %p137 = scmp.le.s32.totalorder 1, %s9
    %p138 = scmp.lt.s32.totalorder %s9, 3
    %p139 = pnand %p137, %p138
    %p140 = pneg %p139
    // Predicated region
    $region29: #{basic_block_forward.5} parent=5 // pred_check
      _
    $region30: #{basic_block_forward.5} parent=5 // pred_check_branch
      %142 = sbr.rel (%p139) target = $region32
    $region31: #{basic_block_forward.5} parent=5 // pred_region
      %s143 = ssub.s32 %s9, 1
      %s144 = smul.u32 8, %s14
      %p145 = scmp.lt.s32.totalorder %s144, 15
      %s146 = scalar_select %p145, %s144, 15
      %s147 = smul.addr %s146, 8
      %s148 = scalar_lea.vmem %s0, %s147
      %p149 = pneg %p35
      %p150 = pneg %p32
      %p151 = pneg %p56
      %p152 = pneg %p53
      %p153 = pneg %p77
      %p154 = pneg %p74
      %p155 = pneg %p103
      %p156 = pneg %p100
      %s157 = smul.u32 8, %s14
      %p158 = scmp.lt.s32.totalorder %s157, 15
      %s159 = scalar_select %p158, %s157, 15
      %s160 = smul.addr %s159, 8
      %s161 = scalar_lea.vmem %s3, %s160
      %s162 = smul.u32 8, %s14
      %p163 = scmp.lt.s32.totalorder %s162, 15
      %s164 = scalar_select %p163, %s162, 15
      %s165 = smul.addr %s164, 8
      %s166 = scalar_lea.vmem %s0, %s165
      %s167 = smul.u32 8, %s14
      %s168 = smul.u32 8, %s14
      %p169 = scmp.lt.s32.totalorder %s168, 15
      %s170 = scalar_select %p169, %s168, 15
      %s171 = smul.addr %s170, 8
      %s172 = scalar_lea.vmem %s3, %s171
      %s173 = smul.u32 8, %s14
      %v174 = vld [vmem:[%s166] sm:$0xff]
      %v175 = vld [vmem:[%s166 + $0x8] sm:$0xff]
      %v176 = vld [vmem:[%s166 + $0x10] sm:$0xff]
      %v177 = vld [vmem:[%s166 + $0x18] sm:$0xff]
      %v178 = vld [vmem:[%s166 + $0x20] sm:$0xff]
      %v179 = vld [vmem:[%s166 + $0x28] sm:$0xff]
      %v180 = vld [vmem:[%s166 + $0x30] sm:$0xff]
      %v181 = vld [vmem:[%s166 + $0x38] sm:$0xff]
      %v182 = vld [vmem:[%s1] sm:$0x1]
      %v184 = vlaneseq
      %v185 = vshrl.u32 %v184, 7
      %v186 = vsub.s32 0, %v185
      %v187 = vrot.slane %v182, %v186
      %v189 = vmul.f32 %v174, %v187
      %v190 = vmul.f32 %v175, %v187
      %v191 = vmul.f32 %v176, %v187
      %v192 = vmul.f32 %v177, %v187
      %v193 = vmul.f32 %v178, %v187
      %v194 = vmul.f32 %v179, %v187
      %v195 = vmul.f32 %v180, %v187
      %v196 = vmul.f32 %v181, %v187
      %v197 = vld [vmem:[%s2] sm:$0x1]
      %v199 = vlaneseq
      %v200 = vshrl.u32 %v199, 7
      %v201 = vsub.s32 0, %v200
      %v202 = vrot.slane %v197, %v201
      %v204 = vadd.f32 %v189, %v202
      %v205 = vadd.f32 %v190, %v202
      %v206 = vadd.f32 %v191, %v202
      %v207 = vadd.f32 %v192, %v202
      %v208 = vadd.f32 %v193, %v202
      %v209 = vadd.f32 %v194, %v202
      %v210 = vadd.f32 %v195, %v202
      %v211 = vadd.f32 %v196, %v202
      %v212 = vmax.f32 %v204, 0.0
      %v213 = vmax.f32 %v205, 0.0
      %v214 = vmax.f32 %v206, 0.0
      %v215 = vmax.f32 %v207, 0.0
      %v216 = vmax.f32 %v208, 0.0
      %v217 = vmax.f32 %v209, 0.0
      %v218 = vmax.f32 %v210, 0.0
      %v219 = vmax.f32 %v211, 0.0
      %220 = vst [vmem:[%s172] sm:$0xff] %v212
      %221 = vst [vmem:[%s172 + $0x8] sm:$0xff] %v213
      %222 = vst [vmem:[%s172 + $0x10] sm:$0xff] %v214
      %223 = vst [vmem:[%s172 + $0x18] sm:$0xff] %v215
      %224 = vst [vmem:[%s172 + $0x20] sm:$0xff] %v216
      %225 = vst [vmem:[%s172 + $0x28] sm:$0xff] %v217
      %226 = vst [vmem:[%s172 + $0x30] sm:$0xff] %v218
      %227 = vst [vmem:[%s172 + $0x38] sm:$0xff] %v219
      %s228 = smul.u32 8, %s14
      %p229 = scmp.lt.s32.totalorder %s228, 15
      %s230 = scalar_select %p229, %s228, 15
      %s231 = smul.addr %s230, 8
      %s232 = scalar_lea.vmem %s3, %s231
      // Predicated region
      $region33: #{basic_block_forward.5} parent=31 // pred_check
        %p233 = pneg %p100
      $region34: #{basic_block_forward.5} parent=31 // pred_check_branch
        %235 = sbr.rel (%p233) target = $region36
      $region35: #{basic_block_forward.5} parent=31 // pred_region
        %s236 = smul.u32 8, %s14
      $region36: #{basic_block_forward.5} parent=31 // pred_fallthru
        _
    $region32: #{basic_block_forward.5} parent=5 // pred_fallthru
      _
    %p237 = scmp.le.s32.totalorder 2, %s9
    // Predicated region
    $region37: #{basic_block_forward.5} parent=5 // pred_check
      %p238 = pneg %p237
    $region38: #{basic_block_forward.5} parent=5 // pred_check_branch
      %240 = sbr.rel (%p238) target = $region40
    $region39: #{basic_block_forward.5} parent=5 // pred_region
      %s241 = ssub.s32 %s9, 2
      // Predicated region
      $region41: #{basic_block_forward.5} parent=39 // pred_check
        %p242 = pneg %p106
      $region42: #{basic_block_forward.5} parent=39 // pred_check_branch
        %244 = sbr.rel (%p242) target = $region44
      $region43: #{basic_block_forward.5} parent=39 // pred_region
        %s245 = smul.u32 8, %s15
        %p246 = scmp.lt.s32.totalorder %s245, 15
        %s247 = scalar_select %p246, %s245, 15
        %s248 = smul.addr %s247, 8
        %s249 = scalar_lea.vmem %s3, %s248
      $region44: #{basic_block_forward.5} parent=39 // pred_fallthru
        _
    $region40: #{basic_block_forward.5} parent=5 // pred_fallthru
      _
  $region6: #{basic_block_forward.5} parent=0 // loop_footer
    %s13 = sadd.s32 1, %s9
  $region7: #{basic_block_forward.5} parent=0 // loop_footer_branch
    %8 = sbr.rel target = $region3
  $region8: #{basic_block_forward.5} parent=0 // loop_exit
    _

// kernel: basic_block_forward.6
$region0: #{basic_block_forward.6}
  #allocation0 [shape = 'u32[]', space=smem, size = 0x4, offset = 0x4, fixed_abs, tag = 'smem constant byte address 0x4 - core index']
  #allocation1 [shape = 'u32[144,128]{1,0:T(1,128)}', space=vmem, size = 0x12000, scoped, tag = 'internal scratch']
  %s0 = inlined_call_operand.vmem [shape: f32[128,128], index: 0, kind: input, shape index: {}]
  %s1 = inlined_call_operand.vmem [shape: f32[128,128], index: 1, kind: input, shape index: {}]
  %s2 = inlined_call_operand.vmem [shape: f32[128,128], index: 2, kind: output, shape index: {0}]
  %s3 = inlined_call_operand.vmem [shape: f32[2,8,256], index: 3, kind: output, shape index: {1}]
  %4 = xla_tuple %s2, %s3
  %s5 = sld [smem:[#allocation0]]
  $region49: #{basic_block_forward.6} parent=0
    _
  %s7 = ssub.s32 1, %s5
  %s8 = scalar_select 0, %s7, %s5
  loop: start=0, step=1, limit=4
  $region2: #{basic_block_forward.6} parent=0 // loop_pre_header
    _
  $region3: #{basic_block_forward.6} parent=0 // loop_header
    %s10 = sphi 0, %s14
    %p11 = scmp.ge.s32.totalorder %s10, 4
    %s20 = sphi 0, %s22
    %s23 = sphi 0, %s20
    %s24 = sphi 0, %s23
    %s40 = sphi 0, %s24
    %s44 = sphi 0, %s44
    %s46 = sphi 0, %s44
    %s47 = sphi 0, %s46
    %s61 = sphi 0, %s47
    %s67 = sphi 0, %s69
    %s70 = sphi 0, %s67
    %s71 = sphi 0, %s70
    %s87 = sphi 0, %s71
    %s93 = sphi 0, %s95
    %s96 = sphi 0, %s93
    %s97 = sphi 0, %s96
    %s113 = sphi 0, %s97
  $region4: #{basic_block_forward.6} parent=0 // loop_header_branch
    %13 = sbr.rel (%p11) target = $region8
  $region5: #{basic_block_forward.6} parent=0 // loop_body
    %s15 = ssub.s32 %s10, 1
    %s16 = ssub.s32 %s10, 2
    %s17 = sadd.s32 %s10, 1
    %s18 = ssub.s32 %s10, %s17
    %p19 = scmp.eq.s32.totalorder %s18, 0
    %s21 = sadd.s32 %s20, 1
    %s22 = scalar_select %p19, %s20, %s21
    %p25 = pneg %p19
    %p26 = scmp.eq.s32.totalorder %s10, 1
    %p27 = por %p25, %p26
    %p28 = scmp.ne.s32.totalorder %s20, %s23
    %p29 = scmp.eq.s32.totalorder %s10, 0
    %p30 = por %p28, %p29
    %p31 = scmp.ne.s32.totalorder %s20, %s23
    %p32 = scmp.eq.s32.totalorder %s15, 1
    %p33 = por %p31, %p32
    %p34 = scmp.ne.s32.totalorder %s23, %s24
    %p35 = scmp.eq.s32.totalorder %s15, 0
    %p36 = por %p34, %p35
    %p37 = scmp.ne.s32.totalorder %s23, %s24
    %p38 = scmp.eq.s32.totalorder %s16, 1
    %p39 = por %p37, %p38
    %p41 = scmp.ne.s32.totalorder %s24, %s40
    %p42 = scmp.eq.s32.totalorder %s16, 0
    %p43 = por %p41, %p42
    %s45 = sadd.s32 %s44, 1
    %p48 = scmp.eq.s32.totalorder %s10, 1
    %p49 = scmp.ne.s32.totalorder %s44, %s46
    %p50 = scmp.eq.s32.totalorder %s10, 0
    %p51 = por %p49, %p50
    %p52 = scmp.ne.s32.totalorder %s44, %s46
    %p53 = scmp.eq.s32.totalorder %s15, 1
    %p54 = por %p52, %p53
    %p55 = scmp.ne.s32.totalorder %s46, %s47
    %p56 = scmp.eq.s32.totalorder %s15, 0
    %p57 = por %p55, %p56
    %p58 = scmp.ne.s32.totalorder %s46, %s47
    %p59 = scmp.eq.s32.totalorder %s16, 1
    %p60 = por %p58, %p59
    %p62 = scmp.ne.s32.totalorder %s47, %s61
    %p63 = scmp.eq.s32.totalorder %s16, 0
    %p64 = por %p62, %p63
    %s65 = ssub.s32 %s10, %s17
    %p66 = scmp.eq.s32.totalorder %s65, 0
    %s68 = sadd.s32 %s67, 1
    %s69 = scalar_select %p66, %s67, %s68
    %p72 = pneg %p66
    %p73 = scmp.eq.s32.totalorder %s10, 1
    %p74 = por %p72, %p73
    %p75 = scmp.ne.s32.totalorder %s67, %s70
    %p76 = scmp.eq.s32.totalorder %s10, 0
    %p77 = por %p75, %p76
    %p78 = scmp.ne.s32.totalorder %s67, %s70
    %p79 = scmp.eq.s32.totalorder %s15, 1
    %p80 = por %p78, %p79
    %p81 = scmp.ne.s32.totalorder %s70, %s71
    %p82 = scmp.eq.s32.totalorder %s15, 0
    %p83 = por %p81, %p82
    %p84 = scmp.ne.s32.totalorder %s70, %s71
    %p85 = scmp.eq.s32.totalorder %s16, 1
    %p86 = por %p84, %p85
    %p88 = scmp.ne.s32.totalorder %s71, %s87
    %p89 = scmp.eq.s32.totalorder %s16, 0
    %p90 = por %p88, %p89
    %s91 = ssub.s32 %s10, %s17
    %p92 = scmp.eq.s32.totalorder %s91, 0
    %s94 = sadd.s32 %s93, 1
    %s95 = scalar_select %p92, %s93, %s94
    %p98 = pneg %p92
    %p99 = scmp.eq.s32.totalorder %s10, 1
    %p100 = por %p98, %p99
    %p101 = scmp.ne.s32.totalorder %s93, %s96
    %p102 = scmp.eq.s32.totalorder %s10, 0
    %p103 = por %p101, %p102
    %p104 = scmp.ne.s32.totalorder %s93, %s96
    %p105 = scmp.eq.s32.totalorder %s15, 1
    %p106 = por %p104, %p105
    %p107 = scmp.ne.s32.totalorder %s96, %s97
    %p108 = scmp.eq.s32.totalorder %s15, 0
    %p109 = por %p107, %p108
    %p110 = scmp.ne.s32.totalorder %s96, %s97
    %p111 = scmp.eq.s32.totalorder %s16, 1
    %p112 = por %p110, %p111
    %p114 = scmp.ne.s32.totalorder %s97, %s113
    %p115 = scmp.eq.s32.totalorder %s16, 0
    %p116 = por %p114, %p115
    %p117 = scmp.le.s32.totalorder 1, %s10
    %p118 = scmp.lt.s32.totalorder %s10, 3
    %p119 = pnand %p117, %p118
    %p120 = pneg %p119
    // Predicated region
    $region9: #{basic_block_forward.6} parent=5 // pred_check
      _
    $region10: #{basic_block_forward.6} parent=5 // pred_check_branch
      %122 = sbr.rel (%p119) target = $region12
    $region11: #{basic_block_forward.6} parent=5 // pred_region
      %s123 = ssub.s32 %s10, 1
      // Predicated region
      $region13: #{basic_block_forward.6} parent=11 // pred_check
        %p124 = pneg %p57
      $region14: #{basic_block_forward.6} parent=11 // pred_check_branch
        %126 = sbr.rel (%p124) target = $region16
      $region15: #{basic_block_forward.6} parent=11 // pred_region
        _
      $region16: #{basic_block_forward.6} parent=11 // pred_fallthru
        _
    $region12: #{basic_block_forward.6} parent=5 // pred_fallthru
      _
    %p127 = scmp.lt.s32.totalorder %s10, 2
    // Predicated region
    $region17: #{basic_block_forward.6} parent=5 // pred_check
      %p128 = pneg %p127
    $region18: #{basic_block_forward.6} parent=5 // pred_check_branch
      %130 = sbr.rel (%p128) target = $region20
    $region19: #{basic_block_forward.6} parent=5 // pred_region
      // Predicated region
      $region21: #{basic_block_forward.6} parent=19 // pred_check
        %p131 = pneg %p30
      $region22: #{basic_block_forward.6} parent=19 // pred_check_branch
        %133 = sbr.rel (%p131) target = $region24
      $region23: #{basic_block_forward.6} parent=19 // pred_region
        %s134 = smul.u32 8, %s10
        %p135 = scmp.lt.s32.totalorder %s134, 15
        %s136 = scalar_select %p135, %s134, 15
        %s137 = smul.addr %s136, 8
        %s138 = scalar_lea.vmem %s0, %s137
        %s139 = smul.u32 8, %s10
      $region24: #{basic_block_forward.6} parent=19 // pred_fallthru
        _
    $region20: #{basic_block_forward.6} parent=5 // pred_fallthru
      _
    %p140 = scmp.le.s32.totalorder 1, %s10
    %p141 = scmp.lt.s32.totalorder %s10, 3
    %p142 = pnand %p140, %p141
    %p143 = pneg %p142
    // Predicated region
    $region25: #{basic_block_forward.6} parent=5 // pred_check
      _
    $region26: #{basic_block_forward.6} parent=5 // pred_check_branch
      %145 = sbr.rel (%p142) target = $region28
    $region27: #{basic_block_forward.6} parent=5 // pred_region
      %s146 = ssub.s32 %s10, 1
      %s147 = smul.u32 8, %s15
      %p148 = scmp.lt.s32.totalorder %s147, 15
      %s149 = scalar_select %p148, %s147, 15
      %s150 = smul.addr %s149, 8
      %s151 = scalar_lea.vmem %s0, %s150
      %p152 = pneg %p36
      %p153 = pneg %p33
      %p154 = pneg %p57
      %p155 = pneg %p54
      %p156 = pneg %p83
      %p157 = pneg %p80
      %s158 = smul.u32 8, %s15
      %p159 = scmp.lt.s32.totalorder %s158, 15
      %s160 = scalar_select %p159, %s158, 15
      %s161 = smul.addr %s160, 8
      %s162 = scalar_lea.vmem %s2, %s161
      %p163 = pneg %p109
      %p164 = pneg %p106
      %p165 = scmp.lt.s32.totalorder %s15, 1
      %s166 = scalar_select %p165, %s15, 1
      %s167 = smul.addr %s166, 2
      %s168 = smul.addr %s167, 8
      %s169 = scalar_lea.vmem %s3, %s168
      %s170 = smul.u32 8, %s15
      %p171 = scmp.lt.s32.totalorder %s170, 15
      %s172 = scalar_select %p171, %s170, 15
      %s173 = smul.addr %s172, 8
      %s174 = scalar_lea.vmem %s0, %s173
      %s175 = smul.u32 8, %s15
      %s176 = smul.u32 8, %s15
      %p177 = scmp.lt.s32.totalorder %s176, 15
      %s178 = scalar_select %p177, %s176, 15
      %s179 = smul.addr %s178, 8
      %s180 = scalar_lea.vmem %s2, %s179
      %s181 = smul.u32 8, %s15
      %p182 = scmp.lt.s32.totalorder %s15, 1
      %s183 = scalar_select %p182, %s15, 1
      %s184 = smul.addr %s183, 2
      %s185 = smul.addr %s184, 8
      %s186 = scalar_lea.vmem %s3, %s185
      %v187 = vld [vmem:[%s174] sm:$0xff]
      %v188 = vld [vmem:[%s174 + $0x8] sm:$0xff]
      %v189 = vld [vmem:[%s174 + $0x10] sm:$0xff]
      %v190 = vld [vmem:[%s174 + $0x18] sm:$0xff]
      %v191 = vld [vmem:[%s174 + $0x20] sm:$0xff]
      %v192 = vld [vmem:[%s174 + $0x28] sm:$0xff]
      %v193 = vld [vmem:[%s174 + $0x30] sm:$0xff]
      %v194 = vld [vmem:[%s174 + $0x38] sm:$0xff]
      %v195 = vld [vmem:[%s1] sm:$0xff]
      %v196 = vld [vmem:[%s1 + $0x8] sm:$0xff]
      %v197 = vld [vmem:[%s1 + $0x10] sm:$0xff]
      %v198 = vld [vmem:[%s1 + $0x18] sm:$0xff]
      %v199 = vld [vmem:[%s1 + $0x20] sm:$0xff]
      %v200 = vld [vmem:[%s1 + $0x28] sm:$0xff]
      %v201 = vld [vmem:[%s1 + $0x30] sm:$0xff]
      %v202 = vld [vmem:[%s1 + $0x38] sm:$0xff]
      %v203 = vld [vmem:[%s1 + $0x40] sm:$0xff]
      %v204 = vld [vmem:[%s1 + $0x48] sm:$0xff]
      %v205 = vld [vmem:[%s1 + $0x50] sm:$0xff]
      %v206 = vld [vmem:[%s1 + $0x58] sm:$0xff]
      %v207 = vld [vmem:[%s1 + $0x60] sm:$0xff]
      %v208 = vld [vmem:[%s1 + $0x68] sm:$0xff]
      %v209 = vld [vmem:[%s1 + $0x70] sm:$0xff]
      %v210 = vld [vmem:[%s1 + $0x78] sm:$0xff]
      %211 = vmatprep.subr.mxu0 0.0
      %212 = vmatpush1.msra.mxu0 %v195
      %213 = vmatprep.subr.mxu0 0.0
      %214 = vmatpush1.msra.mxu0 %v196
      %215 = vmatprep.subr.mxu0 0.0
      %216 = vmatpush1.msra.mxu0 %v197
      %217 = vmatprep.subr.mxu0 0.0
      %218 = vmatpush1.msra.mxu0 %v198
      %219 = vmatprep.subr.mxu0 0.0
      %220 = vmatpush1.msra.mxu0 %v199
      %221 = vmatprep.subr.mxu0 0.0
      %222 = vmatpush1.msra.mxu0 %v200
      %223 = vmatprep.subr.mxu0 0.0
      %224 = vmatpush1.msra.mxu0 %v201
      %225 = vmatprep.subr.mxu0 0.0
      %226 = vmatpush1.msra.mxu0 %v202
      %227 = vmatprep.subr.mxu0 0.0
      %228 = vmatpush1.msra.mxu0 %v203
      %229 = vmatprep.subr.mxu0 0.0
      %230 = vmatpush1.msra.mxu0 %v204
      %231 = vmatprep.subr.mxu0 0.0
      %232 = vmatpush1.msra.mxu0 %v205
      %233 = vmatprep.subr.mxu0 0.0
      %234 = vmatpush1.msra.mxu0 %v206
      %235 = vmatprep.subr.mxu0 0.0
      %236 = vmatpush1.msra.mxu0 %v207
      %237 = vmatprep.subr.mxu0 0.0
      %238 = vmatpush1.msra.mxu0 %v208
      %239 = vmatprep.subr.mxu0 0.0
      %240 = vmatpush1.msra.mxu0 %v209
      %241 = vmatprep.subr.mxu0 0.0
      %242 = vmatpush1.msra.mxu0 %v210
      %243 = vmatprep.subr.mxu0 0.0
      %244 = vmatpush1.msra.mxu0 0.0
      %245 = vmatprep.subr.mxu0 0.0
      %246 = vmatpush1.msra.mxu0 0.0
      %247 = vmatprep.subr.mxu0 0.0
      %248 = vmatpush1.msra.mxu0 0.0
      %249 = vmatprep.subr.mxu0 0.0
      %250 = vmatpush1.msra.mxu0 0.0
      %251 = vmatprep.subr.mxu0 0.0
      %252 = vmatpush1.msra.mxu0 0.0
      %253 = vmatprep.subr.mxu0 0.0
      %254 = vmatpush1.msra.mxu0 0.0
      %255 = vmatprep.subr.mxu0 0.0
      %256 = vmatpush1.msra.mxu0 0.0
      %257 = vmatprep.subr.mxu0 0.0
      %258 = vmatpush1.msra.mxu0 0.0
      %259 = vmatprep.subr.mxu0 0.0
      %260 = vmatpush1.msra.mxu0 0.0
      %261 = vmatprep.subr.mxu0 0.0
      %262 = vmatpush1.msra.mxu0 0.0
      %263 = vmatprep.subr.mxu0 0.0
      %264 = vmatpush1.msra.mxu0 0.0
      %265 = vmatprep.subr.mxu0 0.0
      %266 = vmatpush1.msra.mxu0 0.0
      %267 = vmatprep.subr.mxu0 0.0
      %268 = vmatpush1.msra.mxu0 0.0
      %269 = vmatprep.subr.mxu0 0.0
      %270 = vmatpush1.msra.mxu0 0.0
      %271 = vmatprep.subr.mxu0 0.0
      %272 = vmatpush1.msra.mxu0 0.0
      %273 = vmatprep.subr.mxu0 0.0
      %274 = vmatpush1.msra.mxu0 0.0
      %275 = vmatprep.mubr.f32.mxu0 0.0
      %276 = vmatmul.mubr.f32.gmra.mrb[0].mxu0 %v187
      %v277 = vpop.f32.mrb[0].mxu0
      %v278 = vadd.f32 0.0, %v277
      %v279 = vpop.f32.mrb[0].mxu0
      %280 = vmatprep.mubr.f32.mxu0 0.0
      %281 = vmatmul.mubr.f32.gmra.mrb[0].mxu0 %v188
      %v282 = vpop.f32.mrb[0].mxu0
      %v283 = vadd.f32 0.0, %v282
      %v284 = vpop.f32.mrb[0].mxu0
      %285 = vmatprep.mubr.f32.mxu0 0.0
      %286 = vmatmul.mubr.f32.gmra.mrb[0].mxu0 %v189
      %v287 = vpop.f32.mrb[0].mxu0
      %v288 = vadd.f32 0.0, %v287
      %v289 = vpop.f32.mrb[0].mxu0
      %290 = vmatprep.mubr.f32.mxu0 0.0
      %291 = vmatmul.mubr.f32.gmra.mrb[0].mxu0 %v190
      %v292 = vpop.f32.mrb[0].mxu0
      %v293 = vadd.f32 0.0, %v292
      %v294 = vpop.f32.mrb[0].mxu0
      %295 = vmatprep.mubr.f32.mxu0 0.0
      %296 = vmatmul.mubr.f32.gmra.mrb[0].mxu0 %v191
      %v297 = vpop.f32.mrb[0].mxu0
      %v298 = vadd.f32 0.0, %v297
      %v299 = vpop.f32.mrb[0].mxu0
      %300 = vmatprep.mubr.f32.mxu0 0.0
      %301 = vmatmul.mubr.f32.gmra.mrb[0].mxu0 %v192
      %v302 = vpop.f32.mrb[0].mxu0
      %v303 = vadd.f32 0.0, %v302
      %v304 = vpop.f32.mrb[0].mxu0
      %305 = vmatprep.mubr.f32.mxu0 0.0
      %306 = vmatmul.mubr.f32.gmra.mrb[0].mxu0 %v193
      %v307 = vpop.f32.mrb[0].mxu0
      %v308 = vadd.f32 0.0, %v307
      %v309 = vpop.f32.mrb[0].mxu0
      %310 = vmatprep.mubr.f32.mxu0 0.0
      %311 = vmatmul.mubr.f32.gmra.mrb[0].mxu0 %v194
      %v312 = vpop.f32.mrb[0].mxu0
      %v313 = vadd.f32 0.0, %v312
      %v314 = vpop.f32.mrb[0].mxu0
      %315 = vdwg.mxu0
      %316 = vst [vmem:[%s180] sm:$0xff] %v278
      %317 = vst [vmem:[%s180 + $0x8] sm:$0xff] %v283
      %318 = vst [vmem:[%s180 + $0x10] sm:$0xff] %v288
      %319 = vst [vmem:[%s180 + $0x18] sm:$0xff] %v293
      %320 = vst [vmem:[%s180 + $0x20] sm:$0xff] %v298
      %321 = vst [vmem:[%s180 + $0x28] sm:$0xff] %v303
      %322 = vst [vmem:[%s180 + $0x30] sm:$0xff] %v308
      %323 = vst [vmem:[%s180 + $0x38] sm:$0xff] %v313
      %v324 = vmul.f32 %v278, %v278
      %v325 = vmul.f32 %v283, %v283
      %v326 = vmul.f32 %v288, %v288
      %v327 = vmul.f32 %v293, %v293
      %v328 = vmul.f32 %v298, %v298
      %v329 = vmul.f32 %v303, %v303
      %v330 = vmul.f32 %v308, %v308
      %v331 = vmul.f32 %v313, %v313
      %vm332 = vcmask 523264
      %v334 = vsel %vm332, 1.0, 0
      %336 = vmatprep.subr.mxu0 %v324
      %337 = vmatpush1.msra.mxu0 %v278
      %338 = vmatprep.subr.mxu0 %v325
      %339 = vmatpush1.msra.mxu0 %v283
      %340 = vmatprep.subr.mxu0 %v326
      %341 = vmatpush1.msra.mxu0 %v288
      %342 = vmatprep.subr.mxu0 %v327
      %343 = vmatpush1.msra.mxu0 %v293
      %344 = vmatprep.subr.mxu0 %v328
      %345 = vmatpush1.msra.mxu0 %v298
      %346 = vmatprep.subr.mxu0 %v329
      %347 = vmatpush1.msra.mxu0 %v303
      %348 = vmatprep.subr.mxu0 %v330
      %349 = vmatpush1.msra.mxu0 %v308
      %350 = vmatprep.subr.mxu0 %v331
      %351 = vmatpush1.msra.mxu0 %v313
      %352 = vmatprep.subr.mxu0 0.0
      %353 = vmatpush1.msra.mxu0 0.0
      %354 = vmatprep.subr.mxu0 0.0
      %355 = vmatpush1.msra.mxu0 0.0
      %356 = vmatprep.subr.mxu0 0.0
      %357 = vmatpush1.msra.mxu0 0.0
      %358 = vmatprep.subr.mxu0 0.0
      %359 = vmatpush1.msra.mxu0 0.0
      %360 = vmatprep.subr.mxu0 0.0
      %361 = vmatpush1.msra.mxu0 0.0
      %362 = vmatprep.subr.mxu0 0.0
      %363 = vmatpush1.msra.mxu0 0.0
      %364 = vmatprep.subr.mxu0 0.0
      %365 = vmatpush1.msra.mxu0 0.0
      %366 = vmatprep.subr.mxu0 0.0
      %367 = vmatpush1.msra.mxu0 0.0
      %368 = vmatprep.subr.mxu0 0.0
      %369 = vmatpush1.msra.mxu0 0.0
      %370 = vmatprep.subr.mxu0 0.0
      %371 = vmatpush1.msra.mxu0 0.0
      %372 = vmatprep.subr.mxu0 0.0
      %373 = vmatpush1.msra.mxu0 0.0
      %374 = vmatprep.subr.mxu0 0.0
      %375 = vmatpush1.msra.mxu0 0.0
      %376 = vmatprep.subr.mxu0 0.0
      %377 = vmatpush1.msra.mxu0 0.0
      %378 = vmatprep.subr.mxu0 0.0
      %379 = vmatpush1.msra.mxu0 0.0
      %380 = vmatprep.subr.mxu0 0.0
      %381 = vmatpush1.msra.mxu0 0.0
      %382 = vmatprep.subr.mxu0 0.0
      %383 = vmatpush1.msra.mxu0 0.0
      %384 = vmatprep.subr.mxu0 0.0
      %385 = vmatpush1.msra.mxu0 0.0
      %386 = vmatprep.subr.mxu0 0.0
      %387 = vmatpush1.msra.mxu0 0.0
      %388 = vmatprep.subr.mxu0 0.0
      %389 = vmatpush1.msra.mxu0 0.0
      %390 = vmatprep.subr.mxu0 0.0
      %391 = vmatpush1.msra.mxu0 0.0
      %392 = vmatprep.subr.mxu0 0.0
      %393 = vmatpush1.msra.mxu0 0.0
      %394 = vmatprep.subr.mxu0 0.0
      %395 = vmatpush1.msra.mxu0 0.0
      %396 = vmatprep.subr.mxu0 0.0
      %397 = vmatpush1.msra.mxu0 0.0
      %398 = vmatprep.subr.mxu0 0.0
      %399 = vmatpush1.msra.mxu0 0.0
      %400 = vmatprep.mubr.f32.mxu0 0.0
      %401 = vmatmul.mubr.f32.gmra.mrb[0].mxu0 %v334
      %v402 = vpop.f32.mrb[0].mxu0
      %v403 = vadd.f32 0.0, %v402
      %v404 = vpop.f32.mrb[0].mxu0
      %v405 = vadd.f32 0.0, %v404
      %406 = vdwg.mxu0
      %407 = vst [vmem:[%s186] sm:$0xff] %v403
      %408 = vst [vmem:[%s186 + $0x8] sm:$0xff] %v405
      %s409 = smul.u32 8, %s15
      %p410 = scmp.lt.s32.totalorder %s409, 15
      %s411 = scalar_select %p410, %s409, 15
      %s412 = smul.addr %s411, 8
      %s413 = scalar_lea.vmem %s2, %s412
      %p414 = scmp.lt.s32.totalorder %s15, 1
      %s415 = scalar_select %p414, %s15, 1
      %s416 = smul.addr %s415, 2
      %s417 = smul.addr %s416, 8
      %s418 = scalar_lea.vmem %s3, %s417
      // Predicated region
      $region29: #{basic_block_forward.6} parent=27 // pred_check
        %p419 = pneg %p80
      $region30: #{basic_block_forward.6} parent=27 // pred_check_branch
        %421 = sbr.rel (%p419) target = $region32
      $region31: #{basic_block_forward.6} parent=27 // pred_region
        %s422 = smul.u32 8, %s15
      $region32: #{basic_block_forward.6} parent=27 // pred_fallthru
        _
      // Predicated region
      $region33: #{basic_block_forward.6} parent=27 // pred_check
        %p423 = pneg %p106
      $region34: #{basic_block_forward.6} parent=27 // pred_check_branch
        %425 = sbr.rel (%p423) target = $region36
      $region35: #{basic_block_forward.6} parent=27 // pred_region
        _
      $region36: #{basic_block_forward.6} parent=27 // pred_fallthru
        _
    $region28: #{basic_block_forward.6} parent=5 // pred_fallthru
      _
    %p426 = scmp.le.s32.totalorder 2, %s10
    // Predicated region
    $region37: #{basic_block_forward.6} parent=5 // pred_check
      %p427 = pneg %p426
    $region38: #{basic_block_forward.6} parent=5 // pred_check_branch
      %429 = sbr.rel (%p427) target = $region40
    $region39: #{basic_block_forward.6} parent=5 // pred_region
      %s430 = ssub.s32 %s10, 2
      // Predicated region
      $region41: #{basic_block_forward.6} parent=39 // pred_check
        %p431 = pneg %p86
      $region42: #{basic_block_forward.6} parent=39 // pred_check_branch
        %433 = sbr.rel (%p431) target = $region44
      $region43: #{basic_block_forward.6} parent=39 // pred_region
        %s434 = smul.u32 8, %s16
        %p435 = scmp.lt.s32.totalorder %s434, 15
        %s436 = scalar_select %p435, %s434, 15
        %s437 = smul.addr %s436, 8
        %s438 = scalar_lea.vmem %s2, %s437
      $region44: #{basic_block_forward.6} parent=39 // pred_fallthru
        _
      // Predicated region
      $region45: #{basic_block_forward.6} parent=39 // pred_check
        %p439 = pneg %p112
      $region46: #{basic_block_forward.6} parent=39 // pred_check_branch
        %441 = sbr.rel (%p439) target = $region48
      $region47: #{basic_block_forward.6} parent=39 // pred_region
        %p442 = scmp.lt.s32.totalorder %s16, 1
        %s443 = scalar_select %p442, %s16, 1
        %s444 = smul.addr %s443, 2
        %s445 = smul.addr %s444, 8
        %s446 = scalar_lea.vmem %s3, %s445
      $region48: #{basic_block_forward.6} parent=39 // pred_fallthru
        _
    $region40: #{basic_block_forward.6} parent=5 // pred_fallthru
      _
  $region6: #{basic_block_forward.6} parent=0 // loop_footer
    %s14 = sadd.s32 1, %s10
  $region7: #{basic_block_forward.6} parent=0 // loop_footer_branch
    %9 = sbr.rel target = $region3
  $region8: #{basic_block_forward.6} parent=0 // loop_exit
    _

// kernel: basic_block_forward.4
$region0: #{basic_block_forward.4}
  #allocation0 [shape = 'u32[]', space=smem, size = 0x4, offset = 0x4, fixed_abs, tag = 'smem constant byte address 0x4 - core index']
  #allocation1 [shape = 'u32[144,128]{1,0:T(1,128)}', space=vmem, size = 0x12000, scoped, tag = 'internal scratch']
  %s0 = inlined_call_operand.vmem [shape: f32[128,128], index: 0, kind: input, shape index: {}]
  %s1 = inlined_call_operand.vmem [shape: f32[128,128], index: 1, kind: input, shape index: {}]
  %s2 = inlined_call_operand.vmem [shape: f32[128,128], index: 2, kind: input, shape index: {}]
  %s3 = inlined_call_operand.vmem [shape: f32[128,128], index: 3, kind: output, shape index: {0}]
  %s4 = inlined_call_operand.vmem [shape: f32[128,128], index: 4, kind: output, shape index: {1}]
  %s5 = inlined_call_operand.vmem [shape: f32[2,8,256], index: 5, kind: output, shape index: {2}]
  %s6 = inlined_call_operand.vmem [shape: f32[2,8,256], index: 6, kind: output, shape index: {3}]
  %7 = xla_tuple %s3, %s4, %s5, %s6
  %s8 = sld [smem:[#allocation0]]
  $region69: #{basic_block_forward.4} parent=0
    _
  %s10 = ssub.s32 1, %s8
  %s11 = scalar_select 0, %s10, %s8
  loop: start=0, step=1, limit=4
  $region2: #{basic_block_forward.4} parent=0 // loop_pre_header
    _
  $region3: #{basic_block_forward.4} parent=0 // loop_header
    %s13 = sphi 0, %s17
    %p14 = scmp.ge.s32.totalorder %s13, 4
    %s23 = sphi 0, %s25
    %s26 = sphi 0, %s23
    %s27 = sphi 0, %s26
    %s43 = sphi 0, %s27
    %s47 = sphi 0, %s47
    %s49 = sphi 0, %s47
    %s50 = sphi 0, %s49
    %s64 = sphi 0, %s50
    %s68 = sphi 0, %s68
    %s70 = sphi 0, %s68
    %s71 = sphi 0, %s70
    %s85 = sphi 0, %s71
    %s91 = sphi 0, %s93
    %s94 = sphi 0, %s91
    %s95 = sphi 0, %s94
    %s111 = sphi 0, %s95
    %s117 = sphi 0, %s119
    %s120 = sphi 0, %s117
    %s121 = sphi 0, %s120
    %s137 = sphi 0, %s121
    %s143 = sphi 0, %s145
    %s146 = sphi 0, %s143
    %s147 = sphi 0, %s146
    %s163 = sphi 0, %s147
    %s169 = sphi 0, %s171
    %s172 = sphi 0, %s169
    %s173 = sphi 0, %s172
    %s189 = sphi 0, %s173
  $region4: #{basic_block_forward.4} parent=0 // loop_header_branch
    %16 = sbr.rel (%p14) target = $region8
  $region5: #{basic_block_forward.4} parent=0 // loop_body
    %s18 = ssub.s32 %s13, 1
    %s19 = ssub.s32 %s13, 2
    %s20 = sadd.s32 %s13, 1
    %s21 = ssub.s32 %s13, %s20
    %p22 = scmp.eq.s32.totalorder %s21, 0
    %s24 = sadd.s32 %s23, 1
    %s25 = scalar_select %p22, %s23, %s24
    %p28 = pneg %p22
    %p29 = scmp.eq.s32.totalorder %s13, 1
    %p30 = por %p28, %p29
    %p31 = scmp.ne.s32.totalorder %s23, %s26
    %p32 = scmp.eq.s32.totalorder %s13, 0
    %p33 = por %p31, %p32
    %p34 = scmp.ne.s32.totalorder %s23, %s26
    %p35 = scmp.eq.s32.totalorder %s18, 1
    %p36 = por %p34, %p35
    %p37 = scmp.ne.s32.totalorder %s26, %s27
    %p38 = scmp.eq.s32.totalorder %s18, 0
    %p39 = por %p37, %p38
    %p40 = scmp.ne.s32.totalorder %s26, %s27
    %p41 = scmp.eq.s32.totalorder %s19, 1
    %p42 = por %p40, %p41
    %p44 = scmp.ne.s32.totalorder %s27, %s43
    %p45 = scmp.eq.s32.totalorder %s19, 0
    %p46 = por %p44, %p45
    %s48 = sadd.s32 %s47, 1
    %p51 = scmp.eq.s32.totalorder %s13, 1
    %p52 = scmp.ne.s32.totalorder %s47, %s49
    %p53 = scmp.eq.s32.totalorder %s13, 0
    %p54 = por %p52, %p53
    %p55 = scmp.ne.s32.totalorder %s47, %s49
    %p56 = scmp.eq.s32.totalorder %s18, 1
    %p57 = por %p55, %p56
    %p58 = scmp.ne.s32.totalorder %s49, %s50
    %p59 = scmp.eq.s32.totalorder %s18, 0
    %p60 = por %p58, %p59
    %p61 = scmp.ne.s32.totalorder %s49, %s50
    %p62 = scmp.eq.s32.totalorder %s19, 1
    %p63 = por %p61, %p62
    %p65 = scmp.ne.s32.totalorder %s50, %s64
    %p66 = scmp.eq.s32.totalorder %s19, 0
    %p67 = por %p65, %p66
    %s69 = sadd.s32 %s68, 1
    %p72 = scmp.eq.s32.totalorder %s13, 1
    %p73 = scmp.ne.s32.totalorder %s68, %s70
    %p74 = scmp.eq.s32.totalorder %s13, 0
    %p75 = por %p73, %p74
    %p76 = scmp.ne.s32.totalorder %s68, %s70
    %p77 = scmp.eq.s32.totalorder %s18, 1
    %p78 = por %p76, %p77
    %p79 = scmp.ne.s32.totalorder %s70, %s71
    %p80 = scmp.eq.s32.totalorder %s18, 0
    %p81 = por %p79, %p80
    %p82 = scmp.ne.s32.totalorder %s70, %s71
    %p83 = scmp.eq.s32.totalorder %s19, 1
    %p84 = por %p82, %p83
    %p86 = scmp.ne.s32.totalorder %s71, %s85
    %p87 = scmp.eq.s32.totalorder %s19, 0
    %p88 = por %p86, %p87
    %s89 = ssub.s32 %s13, %s20
    %p90 = scmp.eq.s32.totalorder %s89, 0
    %s92 = sadd.s32 %s91, 1
    %s93 = scalar_select %p90, %s91, %s92
    %p96 = pneg %p90
    %p97 = scmp.eq.s32.totalorder %s13, 1
    %p98 = por %p96, %p97
    %p99 = scmp.ne.s32.totalorder %s91, %s94
    %p100 = scmp.eq.s32.totalorder %s13, 0
    %p101 = por %p99, %p100
    %p102 = scmp.ne.s32.totalorder %s91, %s94
    %p103 = scmp.eq.s32.totalorder %s18, 1
    %p104 = por %p102, %p103
    %p105 = scmp.ne.s32.totalorder %s94, %s95
    %p106 = scmp.eq.s32.totalorder %s18, 0
    %p107 = por %p105, %p106
    %p108 = scmp.ne.s32.totalorder %s94, %s95
    %p109 = scmp.eq.s32.totalorder %s19, 1
    %p110 = por %p108, %p109
    %p112 = scmp.ne.s32.totalorder %s95, %s111
    %p113 = scmp.eq.s32.totalorder %s19, 0
    %p114 = por %p112, %p113
    %s115 = ssub.s32 %s13, %s20
    %p116 = scmp.eq.s32.totalorder %s115, 0
    %s118 = sadd.s32 %s117, 1
    %s119 = scalar_select %p116, %s117, %s118
    %p122 = pneg %p116
    %p123 = scmp.eq.s32.totalorder %s13, 1
    %p124 = por %p122, %p123
    %p125 = scmp.ne.s32.totalorder %s117, %s120
    %p126 = scmp.eq.s32.totalorder %s13, 0
    %p127 = por %p125, %p126
    %p128 = scmp.ne.s32.totalorder %s117, %s120
    %p129 = scmp.eq.s32.totalorder %s18, 1
    %p130 = por %p128, %p129
    %p131 = scmp.ne.s32.totalorder %s120, %s121
    %p132 = scmp.eq.s32.totalorder %s18, 0
    %p133 = por %p131, %p132
    %p134 = scmp.ne.s32.totalorder %s120, %s121
    %p135 = scmp.eq.s32.totalorder %s19, 1
    %p136 = por %p134, %p135
    %p138 = scmp.ne.s32.totalorder %s121, %s137
    %p139 = scmp.eq.s32.totalorder %s19, 0
    %p140 = por %p138, %p139
    %s141 = ssub.s32 %s13, %s20
    %p142 = scmp.eq.s32.totalorder %s141, 0
    %s144 = sadd.s32 %s143, 1
    %s145 = scalar_select %p142, %s143, %s144
    %p148 = pneg %p142
    %p149 = scmp.eq.s32.totalorder %s13, 1
    %p150 = por %p148, %p149
    %p151 = scmp.ne.s32.totalorder %s143, %s146
    %p152 = scmp.eq.s32.totalorder %s13, 0
    %p153 = por %p151, %p152
    %p154 = scmp.ne.s32.totalorder %s143, %s146
    %p155 = scmp.eq.s32.totalorder %s18, 1
    %p156 = por %p154, %p155
    %p157 = scmp.ne.s32.totalorder %s146, %s147
    %p158 = scmp.eq.s32.totalorder %s18, 0
    %p159 = por %p157, %p158
    %p160 = scmp.ne.s32.totalorder %s146, %s147
    %p161 = scmp.eq.s32.totalorder %s19, 1
    %p162 = por %p160, %p161
    %p164 = scmp.ne.s32.totalorder %s147, %s163
    %p165 = scmp.eq.s32.totalorder %s19, 0
    %p166 = por %p164, %p165
    %s167 = ssub.s32 %s13, %s20
    %p168 = scmp.eq.s32.totalorder %s167, 0
    %s170 = sadd.s32 %s169, 1
    %s171 = scalar_select %p168, %s169, %s170
    %p174 = pneg %p168
    %p175 = scmp.eq.s32.totalorder %s13, 1
    %p176 = por %p174, %p175
    %p177 = scmp.ne.s32.totalorder %s169, %s172
    %p178 = scmp.eq.s32.totalorder %s13, 0
    %p179 = por %p177, %p178
    %p180 = scmp.ne.s32.totalorder %s169, %s172
    %p181 = scmp.eq.s32.totalorder %s18, 1
    %p182 = por %p180, %p181
    %p183 = scmp.ne.s32.totalorder %s172, %s173
    %p184 = scmp.eq.s32.totalorder %s18, 0
    %p185 = por %p183, %p184
    %p186 = scmp.ne.s32.totalorder %s172, %s173
    %p187 = scmp.eq.s32.totalorder %s19, 1
    %p188 = por %p186, %p187
    %p190 = scmp.ne.s32.totalorder %s173, %s189
    %p191 = scmp.eq.s32.totalorder %s19, 0
    %p192 = por %p190, %p191
    %p193 = scmp.le.s32.totalorder 1, %s13
    %p194 = scmp.lt.s32.totalorder %s13, 3
    %p195 = pnand %p193, %p194
    %p196 = pneg %p195
    // Predicated region
    $region9: #{basic_block_forward.4} parent=5 // pred_check
      _
    $region10: #{basic_block_forward.4} parent=5 // pred_check_branch
      %198 = sbr.rel (%p195) target = $region12
    $region11: #{basic_block_forward.4} parent=5 // pred_region
      %s199 = ssub.s32 %s13, 1
      // Predicated region
      $region13: #{basic_block_forward.4} parent=11 // pred_check
        %p200 = pneg %p60
      $region14: #{basic_block_forward.4} parent=11 // pred_check_branch
        %202 = sbr.rel (%p200) target = $region16
      $region15: #{basic_block_forward.4} parent=11 // pred_region
        _
      $region16: #{basic_block_forward.4} parent=11 // pred_fallthru
        _
      // Predicated region
      $region17: #{basic_block_forward.4} parent=11 // pred_check
        %p203 = pneg %p81
      $region18: #{basic_block_forward.4} parent=11 // pred_check_branch
        %205 = sbr.rel (%p203) target = $region20
      $region19: #{basic_block_forward.4} parent=11 // pred_region
        _
      $region20: #{basic_block_forward.4} parent=11 // pred_fallthru
        _
    $region12: #{basic_block_forward.4} parent=5 // pred_fallthru
      _
    %p206 = scmp.lt.s32.totalorder %s13, 2
    // Predicated region
    $region21: #{basic_block_forward.4} parent=5 // pred_check
      %p207 = pneg %p206
    $region22: #{basic_block_forward.4} parent=5 // pred_check_branch
      %209 = sbr.rel (%p207) target = $region24
    $region23: #{basic_block_forward.4} parent=5 // pred_region
      // Predicated region
      $region25: #{basic_block_forward.4} parent=23 // pred_check
        %p210 = pneg %p33
      $region26: #{basic_block_forward.4} parent=23 // pred_check_branch
        %212 = sbr.rel (%p210) target = $region28
      $region27: #{basic_block_forward.4} parent=23 // pred_region
        %s213 = smul.u32 8, %s13
        %p214 = scmp.lt.s32.totalorder %s213, 15
        %s215 = scalar_select %p214, %s213, 15
        %s216 = smul.addr %s215, 8
        %s217 = scalar_lea.vmem %s0, %s216
        %s218 = smul.u32 8, %s13
      $region28: #{basic_block_forward.4} parent=23 // pred_fallthru
        _
    $region24: #{basic_block_forward.4} parent=5 // pred_fallthru
      _
    %p219 = scmp.le.s32.totalorder 1, %s13
    %p220 = scmp.lt.s32.totalorder %s13, 3
    %p221 = pnand %p219, %p220
    %p222 = pneg %p221
    // Predicated region
    $region29: #{basic_block_forward.4} parent=5 // pred_check
      _
    $region30: #{basic_block_forward.4} parent=5 // pred_check_branch
      %224 = sbr.rel (%p221) target = $region32
    $region31: #{basic_block_forward.4} parent=5 // pred_region
      %s225 = ssub.s32 %s13, 1
      %s226 = smul.u32 8, %s18
      %p227 = scmp.lt.s32.totalorder %s226, 15
      %s228 = scalar_select %p227, %s226, 15
      %s229 = smul.addr %s228, 8
      %s230 = scalar_lea.vmem %s0, %s229
      %p231 = pneg %p39
      %p232 = pneg %p36
      %p233 = pneg %p60
      %p234 = pneg %p57
      %p235 = pneg %p81
      %p236 = pneg %p78
      %p237 = pneg %p107
      %p238 = pneg %p104
      %s239 = smul.u32 8, %s18
      %p240 = scmp.lt.s32.totalorder %s239, 15
      %s241 = scalar_select %p240, %s239, 15
      %s242 = smul.addr %s241, 8
      %s243 = scalar_lea.vmem %s3, %s242
      %p244 = pneg %p133
      %p245 = pneg %p130
      %s246 = smul.u32 8, %s18
      %p247 = scmp.lt.s32.totalorder %s246, 15
      %s248 = scalar_select %p247, %s246, 15
      %s249 = smul.addr %s248, 8
      %s250 = scalar_lea.vmem %s4, %s249
      %p251 = pneg %p159
      %p252 = pneg %p156
      %p253 = scmp.lt.s32.totalorder %s18, 1
      %s254 = scalar_select %p253, %s18, 1
      %s255 = smul.addr %s254, 2
      %s256 = smul.addr %s255, 8
      %s257 = scalar_lea.vmem %s5, %s256
      %p258 = pneg %p185
      %p259 = pneg %p182
      %p260 = scmp.lt.s32.totalorder %s18, 1
      %s261 = scalar_select %p260, %s18, 1
      %s262 = smul.addr %s261, 2
      %s263 = smul.addr %s262, 8
      %s264 = scalar_lea.vmem %s6, %s263
      %s265 = smul.u32 8, %s18
      %p266 = scmp.lt.s32.totalorder %s265, 15
      %s267 = scalar_select %p266, %s265, 15
      %s268 = smul.addr %s267, 8
      %s269 = scalar_lea.vmem %s0, %s268
      %s270 = smul.u32 8, %s18
      %s271 = smul.u32 8, %s18
      %p272 = scmp.lt.s32.totalorder %s271, 15
      %s273 = scalar_select %p272, %s271, 15
      %s274 = smul.addr %s273, 8
      %s275 = scalar_lea.vmem %s3, %s274
      %s276 = smul.u32 8, %s18
      %s277 = smul.u32 8, %s18
      %p278 = scmp.lt.s32.totalorder %s277, 15
      %s279 = scalar_select %p278, %s277, 15
      %s280 = smul.addr %s279, 8
      %s281 = scalar_lea.vmem %s4, %s280
      %s282 = smul.u32 8, %s18
      %p283 = scmp.lt.s32.totalorder %s18, 1
      %s284 = scalar_select %p283, %s18, 1
      %s285 = smul.addr %s284, 2
      %s286 = smul.addr %s285, 8
      %s287 = scalar_lea.vmem %s5, %s286
      %p288 = scmp.lt.s32.totalorder %s18, 1
      %s289 = scalar_select %p288, %s18, 1
      %s290 = smul.addr %s289, 2
      %s291 = smul.addr %s290, 8
      %s292 = scalar_lea.vmem %s6, %s291
      %v293 = vld [vmem:[%s269] sm:$0xff]
      %v294 = vld [vmem:[%s269 + $0x8] sm:$0xff]
      %v295 = vld [vmem:[%s269 + $0x10] sm:$0xff]
      %v296 = vld [vmem:[%s269 + $0x18] sm:$0xff]
      %v297 = vld [vmem:[%s269 + $0x20] sm:$0xff]
      %v298 = vld [vmem:[%s269 + $0x28] sm:$0xff]
      %v299 = vld [vmem:[%s269 + $0x30] sm:$0xff]
      %v300 = vld [vmem:[%s269 + $0x38] sm:$0xff]
      %v301 = vld [vmem:[%s1] sm:$0xff]
      %v302 = vld [vmem:[%s1 + $0x8] sm:$0xff]
      %v303 = vld [vmem:[%s1 + $0x10] sm:$0xff]
      %v304 = vld [vmem:[%s1 + $0x18] sm:$0xff]
      %v305 = vld [vmem:[%s1 + $0x20] sm:$0xff]
      %v306 = vld [vmem:[%s1 + $0x28] sm:$0xff]
      %v307 = vld [vmem:[%s1 + $0x30] sm:$0xff]
      %v308 = vld [vmem:[%s1 + $0x38] sm:$0xff]
      %v309 = vld [vmem:[%s1 + $0x40] sm:$0xff]
      %v310 = vld [vmem:[%s1 + $0x48] sm:$0xff]
      %v311 = vld [vmem:[%s1 + $0x50] sm:$0xff]
      %v312 = vld [vmem:[%s1 + $0x58] sm:$0xff]
      %v313 = vld [vmem:[%s1 + $0x60] sm:$0xff]
      %v314 = vld [vmem:[%s1 + $0x68] sm:$0xff]
      %v315 = vld [vmem:[%s1 + $0x70] sm:$0xff]
      %v316 = vld [vmem:[%s1 + $0x78] sm:$0xff]
      %317 = vmatprep.subr.mxu0 0.0
      %318 = vmatpush1.msra.mxu0 %v301
      %319 = vmatprep.subr.mxu0 0.0
      %320 = vmatpush1.msra.mxu0 %v302
      %321 = vmatprep.subr.mxu0 0.0
      %322 = vmatpush1.msra.mxu0 %v303
      %323 = vmatprep.subr.mxu0 0.0
      %324 = vmatpush1.msra.mxu0 %v304
      %325 = vmatprep.subr.mxu0 0.0
      %326 = vmatpush1.msra.mxu0 %v305
      %327 = vmatprep.subr.mxu0 0.0
      %328 = vmatpush1.msra.mxu0 %v306
      %329 = vmatprep.subr.mxu0 0.0
      %330 = vmatpush1.msra.mxu0 %v307
      %331 = vmatprep.subr.mxu0 0.0
      %332 = vmatpush1.msra.mxu0 %v308
      %333 = vmatprep.subr.mxu0 0.0
      %334 = vmatpush1.msra.mxu0 %v309
      %335 = vmatprep.subr.mxu0 0.0
      %336 = vmatpush1.msra.mxu0 %v310
      %337 = vmatprep.subr.mxu0 0.0
      %338 = vmatpush1.msra.mxu0 %v311
      %339 = vmatprep.subr.mxu0 0.0
      %340 = vmatpush1.msra.mxu0 %v312
      %341 = vmatprep.subr.mxu0 0.0
      %342 = vmatpush1.msra.mxu0 %v313
      %343 = vmatprep.subr.mxu0 0.0
      %344 = vmatpush1.msra.mxu0 %v314
      %345 = vmatprep.subr.mxu0 0.0
      %346 = vmatpush1.msra.mxu0 %v315
      %347 = vmatprep.subr.mxu0 0.0
      %348 = vmatpush1.msra.mxu0 %v316
      %349 = vmatprep.subr.mxu0 0.0
      %350 = vmatpush1.msra.mxu0 0.0
      %351 = vmatprep.subr.mxu0 0.0
      %352 = vmatpush1.msra.mxu0 0.0
      %353 = vmatprep.subr.mxu0 0.0
      %354 = vmatpush1.msra.mxu0 0.0
      %355 = vmatprep.subr.mxu0 0.0
      %356 = vmatpush1.msra.mxu0 0.0
      %357 = vmatprep.subr.mxu0 0.0
      %358 = vmatpush1.msra.mxu0 0.0
      %359 = vmatprep.subr.mxu0 0.0
      %360 = vmatpush1.msra.mxu0 0.0
      %361 = vmatprep.subr.mxu0 0.0
      %362 = vmatpush1.msra.mxu0 0.0
      %363 = vmatprep.subr.mxu0 0.0
      %364 = vmatpush1.msra.mxu0 0.0
      %365 = vmatprep.subr.mxu0 0.0
      %366 = vmatpush1.msra.mxu0 0.0
      %367 = vmatprep.subr.mxu0 0.0
      %368 = vmatpush1.msra.mxu0 0.0
      %369 = vmatprep.subr.mxu0 0.0
      %370 = vmatpush1.msra.mxu0 0.0
      %371 = vmatprep.subr.mxu0 0.0
      %372 = vmatpush1.msra.mxu0 0.0
      %373 = vmatprep.subr.mxu0 0.0
      %374 = vmatpush1.msra.mxu0 0.0
      %375 = vmatprep.subr.mxu0 0.0
      %376 = vmatpush1.msra.mxu0 0.0
      %377 = vmatprep.subr.mxu0 0.0
      %378 = vmatpush1.msra.mxu0 0.0
      %379 = vmatprep.subr.mxu0 0.0
      %380 = vmatpush1.msra.mxu0 0.0
      %381 = vmatprep.mubr.f32.mxu0 0.0
      %382 = vmatmul.mubr.f32.gmra.mrb[0].mxu0 %v293
      %v383 = vpop.f32.mrb[0].mxu0
      %v384 = vadd.f32 0.0, %v383
      %v385 = vpop.f32.mrb[0].mxu0
      %386 = vmatprep.mubr.f32.mxu0 0.0
      %387 = vmatmul.mubr.f32.gmra.mrb[0].mxu0 %v294
      %v388 = vpop.f32.mrb[0].mxu0
      %v389 = vadd.f32 0.0, %v388
      %v390 = vpop.f32.mrb[0].mxu0
      %391 = vmatprep.mubr.f32.mxu0 0.0
      %392 = vmatmul.mubr.f32.gmra.mrb[0].mxu0 %v295
      %v393 = vpop.f32.mrb[0].mxu0
      %v394 = vadd.f32 0.0, %v393
      %v395 = vpop.f32.mrb[0].mxu0
      %396 = vmatprep.mubr.f32.mxu0 0.0
      %397 = vmatmul.mubr.f32.gmra.mrb[0].mxu0 %v296
      %v398 = vpop.f32.mrb[0].mxu0
      %v399 = vadd.f32 0.0, %v398
      %v400 = vpop.f32.mrb[0].mxu0
      %401 = vmatprep.mubr.f32.mxu0 0.0
      %402 = vmatmul.mubr.f32.gmra.mrb[0].mxu0 %v297
      %v403 = vpop.f32.mrb[0].mxu0
      %v404 = vadd.f32 0.0, %v403
      %v405 = vpop.f32.mrb[0].mxu0
      %406 = vmatprep.mubr.f32.mxu0 0.0
      %407 = vmatmul.mubr.f32.gmra.mrb[0].mxu0 %v298
      %v408 = vpop.f32.mrb[0].mxu0
      %v409 = vadd.f32 0.0, %v408
      %v410 = vpop.f32.mrb[0].mxu0
      %411 = vmatprep.mubr.f32.mxu0 0.0
      %412 = vmatmul.mubr.f32.gmra.mrb[0].mxu0 %v299
      %v413 = vpop.f32.mrb[0].mxu0
      %v414 = vadd.f32 0.0, %v413
      %v415 = vpop.f32.mrb[0].mxu0
      %416 = vmatprep.mubr.f32.mxu0 0.0
      %417 = vmatmul.mubr.f32.gmra.mrb[0].mxu0 %v300
      %v418 = vpop.f32.mrb[0].mxu0
      %v419 = vadd.f32 0.0, %v418
      %v420 = vpop.f32.mrb[0].mxu0
      %421 = vdwg.mxu0
      %422 = vst [vmem:[%s275] sm:$0xff] %v384
      %423 = vst [vmem:[%s275 + $0x8] sm:$0xff] %v389
      %424 = vst [vmem:[%s275 + $0x10] sm:$0xff] %v394
      %425 = vst [vmem:[%s275 + $0x18] sm:$0xff] %v399
      %426 = vst [vmem:[%s275 + $0x20] sm:$0xff] %v404
      %427 = vst [vmem:[%s275 + $0x28] sm:$0xff] %v409
      %428 = vst [vmem:[%s275 + $0x30] sm:$0xff] %v414
      %429 = vst [vmem:[%s275 + $0x38] sm:$0xff] %v419
      %v430 = vmul.f32 %v384, %v384
      %v431 = vmul.f32 %v389, %v389
      %v432 = vmul.f32 %v394, %v394
      %v433 = vmul.f32 %v399, %v399
      %v434 = vmul.f32 %v404, %v404
      %v435 = vmul.f32 %v409, %v409
      %v436 = vmul.f32 %v414, %v414
      %v437 = vmul.f32 %v419, %v419
      %vm438 = vcmask 523264
      %v440 = vsel %vm438, 1.0, 0
      %442 = vmatprep.subr.mxu0 %v430
      %443 = vmatpush1.msra.mxu0 %v384
      %444 = vmatprep.subr.mxu0 %v431
      %445 = vmatpush1.msra.mxu0 %v389
      %446 = vmatprep.subr.mxu0 %v432
      %447 = vmatpush1.msra.mxu0 %v394
      %448 = vmatprep.subr.mxu0 %v433
      %449 = vmatpush1.msra.mxu0 %v399
      %450 = vmatprep.subr.mxu0 %v434
      %451 = vmatpush1.msra.mxu0 %v404
      %452 = vmatprep.subr.mxu0 %v435
      %453 = vmatpush1.msra.mxu0 %v409
      %454 = vmatprep.subr.mxu0 %v436
      %455 = vmatpush1.msra.mxu0 %v414
      %456 = vmatprep.subr.mxu0 %v437
      %457 = vmatpush1.msra.mxu0 %v419
      %458 = vmatprep.subr.mxu0 0.0
      %459 = vmatpush1.msra.mxu0 0.0
      %460 = vmatprep.subr.mxu0 0.0
      %461 = vmatpush1.msra.mxu0 0.0
      %462 = vmatprep.subr.mxu0 0.0
      %463 = vmatpush1.msra.mxu0 0.0
      %464 = vmatprep.subr.mxu0 0.0
      %465 = vmatpush1.msra.mxu0 0.0
      %466 = vmatprep.subr.mxu0 0.0
      %467 = vmatpush1.msra.mxu0 0.0
      %468 = vmatprep.subr.mxu0 0.0
      %469 = vmatpush1.msra.mxu0 0.0
      %470 = vmatprep.subr.mxu0 0.0
      %471 = vmatpush1.msra.mxu0 0.0
      %472 = vmatprep.subr.mxu0 0.0
      %473 = vmatpush1.msra.mxu0 0.0
      %474 = vmatprep.subr.mxu0 0.0
      %475 = vmatpush1.msra.mxu0 0.0
      %476 = vmatprep.subr.mxu0 0.0
      %477 = vmatpush1.msra.mxu0 0.0
      %478 = vmatprep.subr.mxu0 0.0
      %479 = vmatpush1.msra.mxu0 0.0
      %480 = vmatprep.subr.mxu0 0.0
      %481 = vmatpush1.msra.mxu0 0.0
      %482 = vmatprep.subr.mxu0 0.0
      %483 = vmatpush1.msra.mxu0 0.0
      %484 = vmatprep.subr.mxu0 0.0
      %485 = vmatpush1.msra.mxu0 0.0
      %486 = vmatprep.subr.mxu0 0.0
      %487 = vmatpush1.msra.mxu0 0.0
      %488 = vmatprep.subr.mxu0 0.0
      %489 = vmatpush1.msra.mxu0 0.0
      %490 = vmatprep.subr.mxu0 0.0
      %491 = vmatpush1.msra.mxu0 0.0
      %492 = vmatprep.subr.mxu0 0.0
      %493 = vmatpush1.msra.mxu0 0.0
      %494 = vmatprep.subr.mxu0 0.0
      %495 = vmatpush1.msra.mxu0 0.0
      %496 = vmatprep.subr.mxu0 0.0
      %497 = vmatpush1.msra.mxu0 0.0
      %498 = vmatprep.subr.mxu0 0.0
      %499 = vmatpush1.msra.mxu0 0.0
      %500 = vmatprep.subr.mxu0 0.0
      %501 = vmatpush1.msra.mxu0 0.0
      %502 = vmatprep.subr.mxu0 0.0
      %503 = vmatpush1.msra.mxu0 0.0
      %504 = vmatprep.subr.mxu0 0.0
      %505 = vmatpush1.msra.mxu0 0.0
      %506 = vmatprep.mubr.f32.mxu0 0.0
      %507 = vmatmul.mubr.f32.gmra.mrb[0].mxu0 %v440
      %v508 = vpop.f32.mrb[0].mxu0
      %v509 = vadd.f32 0.0, %v508
      %v510 = vpop.f32.mrb[0].mxu0
      %v511 = vadd.f32 0.0, %v510
      %512 = vdwg.mxu0
      %513 = vst [vmem:[%s287] sm:$0xff] %v509
      %514 = vst [vmem:[%s287 + $0x8] sm:$0xff] %v511
      %v515 = vld [vmem:[%s2] sm:$0xff]
      %v516 = vld [vmem:[%s2 + $0x8] sm:$0xff]
      %v517 = vld [vmem:[%s2 + $0x10] sm:$0xff]
      %v518 = vld [vmem:[%s2 + $0x18] sm:$0xff]
      %v519 = vld [vmem:[%s2 + $0x20] sm:$0xff]
      %v520 = vld [vmem:[%s2 + $0x28] sm:$0xff]
      %v521 = vld [vmem:[%s2 + $0x30] sm:$0xff]
      %v522 = vld [vmem:[%s2 + $0x38] sm:$0xff]
      %v523 = vld [vmem:[%s2 + $0x40] sm:$0xff]
      %v524 = vld [vmem:[%s2 + $0x48] sm:$0xff]
      %v525 = vld [vmem:[%s2 + $0x50] sm:$0xff]
      %v526 = vld [vmem:[%s2 + $0x58] sm:$0xff]
      %v527 = vld [vmem:[%s2 + $0x60] sm:$0xff]
      %v528 = vld [vmem:[%s2 + $0x68] sm:$0xff]
      %v529 = vld [vmem:[%s2 + $0x70] sm:$0xff]
      %v530 = vld [vmem:[%s2 + $0x78] sm:$0xff]
      %531 = vmatprep.subr.mxu0 0.0
      %532 = vmatpush1.msra.mxu0 %v515
      %533 = vmatprep.subr.mxu0 0.0
      %534 = vmatpush1.msra.mxu0 %v516
      %535 = vmatprep.subr.mxu0 0.0
      %536 = vmatpush1.msra.mxu0 %v517
      %537 = vmatprep.subr.mxu0 0.0
      %538 = vmatpush1.msra.mxu0 %v518
      %539 = vmatprep.subr.mxu0 0.0
      %540 = vmatpush1.msra.mxu0 %v519
      %541 = vmatprep.subr.mxu0 0.0
      %542 = vmatpush1.msra.mxu0 %v520
      %543 = vmatprep.subr.mxu0 0.0
      %544 = vmatpush1.msra.mxu0 %v521
      %545 = vmatprep.subr.mxu0 0.0
      %546 = vmatpush1.msra.mxu0 %v522
      %547 = vmatprep.subr.mxu0 0.0
      %548 = vmatpush1.msra.mxu0 %v523
      %549 = vmatprep.subr.mxu0 0.0
      %550 = vmatpush1.msra.mxu0 %v524
      %551 = vmatprep.subr.mxu0 0.0
      %552 = vmatpush1.msra.mxu0 %v525
      %553 = vmatprep.subr.mxu0 0.0
      %554 = vmatpush1.msra.mxu0 %v526
      %555 = vmatprep.subr.mxu0 0.0
      %556 = vmatpush1.msra.mxu0 %v527
      %557 = vmatprep.subr.mxu0 0.0
      %558 = vmatpush1.msra.mxu0 %v528
      %559 = vmatprep.subr.mxu0 0.0
      %560 = vmatpush1.msra.mxu0 %v529
      %561 = vmatprep.subr.mxu0 0.0
      %562 = vmatpush1.msra.mxu0 %v530
      %563 = vmatprep.subr.mxu0 0.0
      %564 = vmatpush1.msra.mxu0 0.0
      %565 = vmatprep.subr.mxu0 0.0
      %566 = vmatpush1.msra.mxu0 0.0
      %567 = vmatprep.subr.mxu0 0.0
      %568 = vmatpush1.msra.mxu0 0.0
      %569 = vmatprep.subr.mxu0 0.0
      %570 = vmatpush1.msra.mxu0 0.0
      %571 = vmatprep.subr.mxu0 0.0
      %572 = vmatpush1.msra.mxu0 0.0
      %573 = vmatprep.subr.mxu0 0.0
      %574 = vmatpush1.msra.mxu0 0.0
      %575 = vmatprep.subr.mxu0 0.0
      %576 = vmatpush1.msra.mxu0 0.0
      %577 = vmatprep.subr.mxu0 0.0
      %578 = vmatpush1.msra.mxu0 0.0
      %579 = vmatprep.subr.mxu0 0.0
      %580 = vmatpush1.msra.mxu0 0.0
      %581 = vmatprep.subr.mxu0 0.0
      %582 = vmatpush1.msra.mxu0 0.0
      %583 = vmatprep.subr.mxu0 0.0
      %584 = vmatpush1.msra.mxu0 0.0
      %585 = vmatprep.subr.mxu0 0.0
      %586 = vmatpush1.msra.mxu0 0.0
      %587 = vmatprep.subr.mxu0 0.0
      %588 = vmatpush1.msra.mxu0 0.0
      %589 = vmatprep.subr.mxu0 0.0
      %590 = vmatpush1.msra.mxu0 0.0
      %591 = vmatprep.subr.mxu0 0.0
      %592 = vmatpush1.msra.mxu0 0.0
      %593 = vmatprep.subr.mxu0 0.0
      %594 = vmatpush1.msra.mxu0 0.0
      %595 = vmatprep.mubr.f32.mxu0 0.0
      %596 = vmatmul.mubr.f32.gmra.mrb[0].mxu0 %v293
      %v597 = vpop.f32.mrb[0].mxu0
      %v598 = vadd.f32 0.0, %v597
      %v599 = vpop.f32.mrb[0].mxu0
      %600 = vmatprep.mubr.f32.mxu0 0.0
      %601 = vmatmul.mubr.f32.gmra.mrb[0].mxu0 %v294
      %v602 = vpop.f32.mrb[0].mxu0
      %v603 = vadd.f32 0.0, %v602
      %v604 = vpop.f32.mrb[0].mxu0
      %605 = vmatprep.mubr.f32.mxu0 0.0
      %606 = vmatmul.mubr.f32.gmra.mrb[0].mxu0 %v295
      %v607 = vpop.f32.mrb[0].mxu0
      %v608 = vadd.f32 0.0, %v607
      %v609 = vpop.f32.mrb[0].mxu0
      %610 = vmatprep.mubr.f32.mxu0 0.0
      %611 = vmatmul.mubr.f32.gmra.mrb[0].mxu0 %v296
      %v612 = vpop.f32.mrb[0].mxu0
      %v613 = vadd.f32 0.0, %v612
      %v614 = vpop.f32.mrb[0].mxu0
      %615 = vmatprep.mubr.f32.mxu0 0.0
      %616 = vmatmul.mubr.f32.gmra.mrb[0].mxu0 %v297
      %v617 = vpop.f32.mrb[0].mxu0
      %v618 = vadd.f32 0.0, %v617
      %v619 = vpop.f32.mrb[0].mxu0
      %620 = vmatprep.mubr.f32.mxu0 0.0
      %621 = vmatmul.mubr.f32.gmra.mrb[0].mxu0 %v298
      %v622 = vpop.f32.mrb[0].mxu0
      %v623 = vadd.f32 0.0, %v622
      %v624 = vpop.f32.mrb[0].mxu0
      %625 = vmatprep.mubr.f32.mxu0 0.0
      %626 = vmatmul.mubr.f32.gmra.mrb[0].mxu0 %v299
      %v627 = vpop.f32.mrb[0].mxu0
      %v628 = vadd.f32 0.0, %v627
      %v629 = vpop.f32.mrb[0].mxu0
      %630 = vmatprep.mubr.f32.mxu0 0.0
      %631 = vmatmul.mubr.f32.gmra.mrb[0].mxu0 %v300
      %v632 = vpop.f32.mrb[0].mxu0
      %v633 = vadd.f32 0.0, %v632
      %v634 = vpop.f32.mrb[0].mxu0
      %635 = vdwg.mxu0
      %636 = vst [vmem:[%s281] sm:$0xff] %v598
      %637 = vst [vmem:[%s281 + $0x8] sm:$0xff] %v603
      %638 = vst [vmem:[%s281 + $0x10] sm:$0xff] %v608
      %639 = vst [vmem:[%s281 + $0x18] sm:$0xff] %v613
      %640 = vst [vmem:[%s281 + $0x20] sm:$0xff] %v618
      %641 = vst [vmem:[%s281 + $0x28] sm:$0xff] %v623
      %642 = vst [vmem:[%s281 + $0x30] sm:$0xff] %v628
      %643 = vst [vmem:[%s281 + $0x38] sm:$0xff] %v633
      %v644 = vmul.f32 %v598, %v598
      %v645 = vmul.f32 %v603, %v603
      %v646 = vmul.f32 %v608, %v608
      %v647 = vmul.f32 %v613, %v613
      %v648 = vmul.f32 %v618, %v618
      %v649 = vmul.f32 %v623, %v623
      %v650 = vmul.f32 %v628, %v628
      %v651 = vmul.f32 %v633, %v633
      %652 = vmatprep.subr.mxu0 %v644
      %653 = vmatpush1.msra.mxu0 %v598
      %654 = vmatprep.subr.mxu0 %v645
      %655 = vmatpush1.msra.mxu0 %v603
      %656 = vmatprep.subr.mxu0 %v646
      %657 = vmatpush1.msra.mxu0 %v608
      %658 = vmatprep.subr.mxu0 %v647
      %659 = vmatpush1.msra.mxu0 %v613
      %660 = vmatprep.subr.mxu0 %v648
      %661 = vmatpush1.msra.mxu0 %v618
      %662 = vmatprep.subr.mxu0 %v649
      %663 = vmatpush1.msra.mxu0 %v623
      %664 = vmatprep.subr.mxu0 %v650
      %665 = vmatpush1.msra.mxu0 %v628
      %666 = vmatprep.subr.mxu0 %v651
      %667 = vmatpush1.msra.mxu0 %v633
      %668 = vmatprep.subr.mxu0 0.0
      %669 = vmatpush1.msra.mxu0 0.0
      %670 = vmatprep.subr.mxu0 0.0
      %671 = vmatpush1.msra.mxu0 0.0
      %672 = vmatprep.subr.mxu0 0.0
      %673 = vmatpush1.msra.mxu0 0.0
      %674 = vmatprep.subr.mxu0 0.0
      %675 = vmatpush1.msra.mxu0 0.0
      %676 = vmatprep.subr.mxu0 0.0
      %677 = vmatpush1.msra.mxu0 0.0
      %678 = vmatprep.subr.mxu0 0.0
      %679 = vmatpush1.msra.mxu0 0.0
      %680 = vmatprep.subr.mxu0 0.0
      %681 = vmatpush1.msra.mxu0 0.0
      %682 = vmatprep.subr.mxu0 0.0
      %683 = vmatpush1.msra.mxu0 0.0
      %684 = vmatprep.subr.mxu0 0.0
      %685 = vmatpush1.msra.mxu0 0.0
      %686 = vmatprep.subr.mxu0 0.0
      %687 = vmatpush1.msra.mxu0 0.0
      %688 = vmatprep.subr.mxu0 0.0
      %689 = vmatpush1.msra.mxu0 0.0
      %690 = vmatprep.subr.mxu0 0.0
      %691 = vmatpush1.msra.mxu0 0.0
      %692 = vmatprep.subr.mxu0 0.0
      %693 = vmatpush1.msra.mxu0 0.0
      %694 = vmatprep.subr.mxu0 0.0
      %695 = vmatpush1.msra.mxu0 0.0
      %696 = vmatprep.subr.mxu0 0.0
      %697 = vmatpush1.msra.mxu0 0.0
      %698 = vmatprep.subr.mxu0 0.0
      %699 = vmatpush1.msra.mxu0 0.0
      %700 = vmatprep.subr.mxu0 0.0
      %701 = vmatpush1.msra.mxu0 0.0
      %702 = vmatprep.subr.mxu0 0.0
      %703 = vmatpush1.msra.mxu0 0.0
      %704 = vmatprep.subr.mxu0 0.0
      %705 = vmatpush1.msra.mxu0 0.0
      %706 = vmatprep.subr.mxu0 0.0
      %707 = vmatpush1.msra.mxu0 0.0
      %708 = vmatprep.subr.mxu0 0.0
      %709 = vmatpush1.msra.mxu0 0.0
      %710 = vmatprep.subr.mxu0 0.0
      %711 = vmatpush1.msra.mxu0 0.0
      %712 = vmatprep.subr.mxu0 0.0
      %713 = vmatpush1.msra.mxu0 0.0
      %714 = vmatprep.subr.mxu0 0.0
      %715 = vmatpush1.msra.mxu0 0.0
      %716 = vmatprep.mubr.f32.mxu0 0.0
      %717 = vmatmul.mubr.f32.gmra.mrb[0].mxu0 %v440
      %v718 = vpop.f32.mrb[0].mxu0
      %v719 = vadd.f32 0.0, %v718
      %v720 = vpop.f32.mrb[0].mxu0
      %v721 = vadd.f32 0.0, %v720
      %722 = vdwg.mxu0
      %723 = vst [vmem:[%s292] sm:$0xff] %v719
      %724 = vst [vmem:[%s292 + $0x8] sm:$0xff] %v721
      %s725 = smul.u32 8, %s18
      %p726 = scmp.lt.s32.totalorder %s725, 15
      %s727 = scalar_select %p726, %s725, 15
      %s728 = smul.addr %s727, 8
      %s729 = scalar_lea.vmem %s3, %s728
      %s730 = smul.u32 8, %s18
      %p731 = scmp.lt.s32.totalorder %s730, 15
      %s732 = scalar_select %p731, %s730, 15
      %s733 = smul.addr %s732, 8
      %s734 = scalar_lea.vmem %s4, %s733
      %p735 = scmp.lt.s32.totalorder %s18, 1
      %s736 = scalar_select %p735, %s18, 1
      %s737 = smul.addr %s736, 2
      %s738 = smul.addr %s737, 8
      %s739 = scalar_lea.vmem %s5, %s738
      %p740 = scmp.lt.s32.totalorder %s18, 1
      %s741 = scalar_select %p740, %s18, 1
      %s742 = smul.addr %s741, 2
      %s743 = smul.addr %s742, 8
      %s744 = scalar_lea.vmem %s6, %s743
      // Predicated region
      $region33: #{basic_block_forward.4} parent=31 // pred_check
        %p745 = pneg %p104
      $region34: #{basic_block_forward.4} parent=31 // pred_check_branch
        %747 = sbr.rel (%p745) target = $region36
      $region35: #{basic_block_forward.4} parent=31 // pred_region
        %s748 = smul.u32 8, %s18
      $region36: #{basic_block_forward.4} parent=31 // pred_fallthru
        _
      // Predicated region
      $region37: #{basic_block_forward.4} parent=31 // pred_check
        %p749 = pneg %p130
      $region38: #{basic_block_forward.4} parent=31 // pred_check_branch
        %751 = sbr.rel (%p749) target = $region40
      $region39: #{basic_block_forward.4} parent=31 // pred_region
        %s752 = smul.u32 8, %s18
      $region40: #{basic_block_forward.4} parent=31 // pred_fallthru
        _
      // Predicated region
      $region41: #{basic_block_forward.4} parent=31 // pred_check
        %p753 = pneg %p156
      $region42: #{basic_block_forward.4} parent=31 // pred_check_branch
        %755 = sbr.rel (%p753) target = $region44
      $region43: #{basic_block_forward.4} parent=31 // pred_region
        _
      $region44: #{basic_block_forward.4} parent=31 // pred_fallthru
        _
      // Predicated region
      $region45: #{basic_block_forward.4} parent=31 // pred_check
        %p756 = pneg %p182
      $region46: #{basic_block_forward.4} parent=31 // pred_check_branch
        %758 = sbr.rel (%p756) target = $region48
      $region47: #{basic_block_forward.4} parent=31 // pred_region
        _
      $region48: #{basic_block_forward.4} parent=31 // pred_fallthru
        _
    $region32: #{basic_block_forward.4} parent=5 // pred_fallthru
      _
    %p759 = scmp.le.s32.totalorder 2, %s13
    // Predicated region
    $region49: #{basic_block_forward.4} parent=5 // pred_check
      %p760 = pneg %p759
    $region50: #{basic_block_forward.4} parent=5 // pred_check_branch
      %762 = sbr.rel (%p760) target = $region52
    $region51: #{basic_block_forward.4} parent=5 // pred_region
      %s763 = ssub.s32 %s13, 2
      // Predicated region
      $region53: #{basic_block_forward.4} parent=51 // pred_check
        %p764 = pneg %p110
      $region54: #{basic_block_forward.4} parent=51 // pred_check_branch
        %766 = sbr.rel (%p764) target = $region56
      $region55: #{basic_block_forward.4} parent=51 // pred_region
        %s767 = smul.u32 8, %s19
        %p768 = scmp.lt.s32.totalorder %s767, 15
        %s769 = scalar_select %p768, %s767, 15
        %s770 = smul.addr %s769, 8
        %s771 = scalar_lea.vmem %s3, %s770
      $region56: #{basic_block_forward.4} parent=51 // pred_fallthru
        _
      // Predicated region
      $region57: #{basic_block_forward.4} parent=51 // pred_check
        %p772 = pneg %p136
      $region58: #{basic_block_forward.4} parent=51 // pred_check_branch
        %774 = sbr.rel (%p772) target = $region60
      $region59: #{basic_block_forward.4} parent=51 // pred_region
        %s775 = smul.u32 8, %s19
        %p776 = scmp.lt.s32.totalorder %s775, 15
        %s777 = scalar_select %p776, %s775, 15
        %s778 = smul.addr %s777, 8
        %s779 = scalar_lea.vmem %s4, %s778
      $region60: #{basic_block_forward.4} parent=51 // pred_fallthru
        _
      // Predicated region
      $region61: #{basic_block_forward.4} parent=51 // pred_check
        %p780 = pneg %p162
      $region62: #{basic_block_forward.4} parent=51 // pred_check_branch
        %782 = sbr.rel (%p780) target = $region64
      $region63: #{basic_block_forward.4} parent=51 // pred_region
        %p783 = scmp.lt.s32.totalorder %s19, 1
        %s784 = scalar_select %p783, %s19, 1
        %s785 = smul.addr %s784, 2
        %s786 = smul.addr %s785, 8
        %s787 = scalar_lea.vmem %s5, %s786
      $region64: #{basic_block_forward.4} parent=51 // pred_fallthru
        _
      // Predicated region
      $region65: #{basic_block_forward.4} parent=51 // pred_check
        %p788 = pneg %p188
      $region66: #{basic_block_forward.4} parent=51 // pred_check_branch
        %790 = sbr.rel (%p788) target = $region68
      $region67: #{basic_block_forward.4} parent=51 // pred_region
        %p791 = scmp.lt.s32.totalorder %s19, 1
        %s792 = scalar_select %p791, %s19, 1
        %s793 = smul.addr %s792, 2
        %s794 = smul.addr %s793, 8
        %s795 = scalar_lea.vmem %s6, %s794
      $region68: #{basic_block_forward.4} parent=51 // pred_fallthru
        _
    $region52: #{basic_block_forward.4} parent=5 // pred_fallthru
      _
  $region6: #{basic_block_forward.4} parent=0 // loop_footer
    %s17 = sadd.s32 1, %s13
  $region7: #{basic_block_forward.4} parent=0 // loop_footer_branch
    %12 = sbr.rel target = $region3
  $region8: #{basic_block_forward.4} parent=0 // loop_exit
    _

// kernel: basic_block_forward.7
$region0: #{basic_block_forward.7}
  #allocation0 [shape = 'u32[]', space=smem, size = 0x4, offset = 0x4, fixed_abs, tag = 'smem constant byte address 0x4 - core index']
  #allocation1 [shape = 'u32[144,128]{1,0:T(1,128)}', space=vmem, size = 0x12000, scoped, tag = 'internal scratch']
  %s0 = inlined_call_operand.vmem [shape: f32[128,128], index: 0, kind: input, shape index: {}, may-alias: {0,6}]
  %s1 = inlined_call_operand.vmem [shape: f32[1,128], index: 1, kind: input, shape index: {}]
  %s2 = inlined_call_operand.vmem [shape: f32[1,128], index: 2, kind: input, shape index: {}]
  %s3 = inlined_call_operand.vmem [shape: f32[128,128], index: 3, kind: input, shape index: {}]
  %s4 = inlined_call_operand.vmem [shape: f32[1,128], index: 4, kind: input, shape index: {}]
  %s5 = inlined_call_operand.vmem [shape: f32[1,128], index: 5, kind: input, shape index: {}]
  %s6 = inlined_call_operand.vmem [shape: f32[128,128], index: 6, kind: output, shape index: {}, may-alias: {0,6}]
  %s7 = sld [smem:[#allocation0]]
  $region57: #{basic_block_forward.7} parent=0
    _
  %s9 = ssub.s32 1, %s7
  %s10 = scalar_select 0, %s9, %s7
  loop: start=0, step=1, limit=4
  $region2: #{basic_block_forward.7} parent=0 // loop_pre_header
    _
  $region3: #{basic_block_forward.7} parent=0 // loop_header
    %s12 = sphi 0, %s16
    %p13 = scmp.ge.s32.totalorder %s12, 4
    %s22 = sphi 0, %s24
    %s25 = sphi 0, %s22
    %s26 = sphi 0, %s25
    %s42 = sphi 0, %s26
    %s46 = sphi 0, %s46
    %s48 = sphi 0, %s46
    %s49 = sphi 0, %s48
    %s63 = sphi 0, %s49
    %s67 = sphi 0, %s67
    %s69 = sphi 0, %s67
    %s70 = sphi 0, %s69
    %s84 = sphi 0, %s70
    %s90 = sphi 0, %s92
    %s93 = sphi 0, %s90
    %s94 = sphi 0, %s93
    %s110 = sphi 0, %s94
    %s114 = sphi 0, %s114
    %s116 = sphi 0, %s114
    %s117 = sphi 0, %s116
    %s131 = sphi 0, %s117
    %s135 = sphi 0, %s135
    %s137 = sphi 0, %s135
    %s138 = sphi 0, %s137
    %s152 = sphi 0, %s138
    %s158 = sphi 0, %s160
    %s161 = sphi 0, %s158
    %s162 = sphi 0, %s161
    %s178 = sphi 0, %s162
  $region4: #{basic_block_forward.7} parent=0 // loop_header_branch
    %15 = sbr.rel (%p13) target = $region8
  $region5: #{basic_block_forward.7} parent=0 // loop_body
    %s17 = ssub.s32 %s12, 1
    %s18 = ssub.s32 %s12, 2
    %s19 = sadd.s32 %s12, 1
    %s20 = ssub.s32 %s12, %s19
    %p21 = scmp.eq.s32.totalorder %s20, 0
    %s23 = sadd.s32 %s22, 1
    %s24 = scalar_select %p21, %s22, %s23
    %p27 = pneg %p21
    %p28 = scmp.eq.s32.totalorder %s12, 1
    %p29 = por %p27, %p28
    %p30 = scmp.ne.s32.totalorder %s22, %s25
    %p31 = scmp.eq.s32.totalorder %s12, 0
    %p32 = por %p30, %p31
    %p33 = scmp.ne.s32.totalorder %s22, %s25
    %p34 = scmp.eq.s32.totalorder %s17, 1
    %p35 = por %p33, %p34
    %p36 = scmp.ne.s32.totalorder %s25, %s26
    %p37 = scmp.eq.s32.totalorder %s17, 0
    %p38 = por %p36, %p37
    %p39 = scmp.ne.s32.totalorder %s25, %s26
    %p40 = scmp.eq.s32.totalorder %s18, 1
    %p41 = por %p39, %p40
    %p43 = scmp.ne.s32.totalorder %s26, %s42
    %p44 = scmp.eq.s32.totalorder %s18, 0
    %p45 = por %p43, %p44
    %s47 = sadd.s32 %s46, 1
    %p50 = scmp.eq.s32.totalorder %s12, 1
    %p51 = scmp.ne.s32.totalorder %s46, %s48
    %p52 = scmp.eq.s32.totalorder %s12, 0
    %p53 = por %p51, %p52
    %p54 = scmp.ne.s32.totalorder %s46, %s48
    %p55 = scmp.eq.s32.totalorder %s17, 1
    %p56 = por %p54, %p55
    %p57 = scmp.ne.s32.totalorder %s48, %s49
    %p58 = scmp.eq.s32.totalorder %s17, 0
    %p59 = por %p57, %p58
    %p60 = scmp.ne.s32.totalorder %s48, %s49
    %p61 = scmp.eq.s32.totalorder %s18, 1
    %p62 = por %p60, %p61
    %p64 = scmp.ne.s32.totalorder %s49, %s63
    %p65 = scmp.eq.s32.totalorder %s18, 0
    %p66 = por %p64, %p65
    %s68 = sadd.s32 %s67, 1
    %p71 = scmp.eq.s32.totalorder %s12, 1
    %p72 = scmp.ne.s32.totalorder %s67, %s69
    %p73 = scmp.eq.s32.totalorder %s12, 0
    %p74 = por %p72, %p73
    %p75 = scmp.ne.s32.totalorder %s67, %s69
    %p76 = scmp.eq.s32.totalorder %s17, 1
    %p77 = por %p75, %p76
    %p78 = scmp.ne.s32.totalorder %s69, %s70
    %p79 = scmp.eq.s32.totalorder %s17, 0
    %p80 = por %p78, %p79
    %p81 = scmp.ne.s32.totalorder %s69, %s70
    %p82 = scmp.eq.s32.totalorder %s18, 1
    %p83 = por %p81, %p82
    %p85 = scmp.ne.s32.totalorder %s70, %s84
    %p86 = scmp.eq.s32.totalorder %s18, 0
    %p87 = por %p85, %p86
    %s88 = ssub.s32 %s12, %s19
    %p89 = scmp.eq.s32.totalorder %s88, 0
    %s91 = sadd.s32 %s90, 1
    %s92 = scalar_select %p89, %s90, %s91
    %p95 = pneg %p89
    %p96 = scmp.eq.s32.totalorder %s12, 1
    %p97 = por %p95, %p96
    %p98 = scmp.ne.s32.totalorder %s90, %s93
    %p99 = scmp.eq.s32.totalorder %s12, 0
    %p100 = por %p98, %p99
    %p101 = scmp.ne.s32.totalorder %s90, %s93
    %p102 = scmp.eq.s32.totalorder %s17, 1
    %p103 = por %p101, %p102
    %p104 = scmp.ne.s32.totalorder %s93, %s94
    %p105 = scmp.eq.s32.totalorder %s17, 0
    %p106 = por %p104, %p105
    %p107 = scmp.ne.s32.totalorder %s93, %s94
    %p108 = scmp.eq.s32.totalorder %s18, 1
    %p109 = por %p107, %p108
    %p111 = scmp.ne.s32.totalorder %s94, %s110
    %p112 = scmp.eq.s32.totalorder %s18, 0
    %p113 = por %p111, %p112
    %s115 = sadd.s32 %s114, 1
    %p118 = scmp.eq.s32.totalorder %s12, 1
    %p119 = scmp.ne.s32.totalorder %s114, %s116
    %p120 = scmp.eq.s32.totalorder %s12, 0
    %p121 = por %p119, %p120
    %p122 = scmp.ne.s32.totalorder %s114, %s116
    %p123 = scmp.eq.s32.totalorder %s17, 1
    %p124 = por %p122, %p123
    %p125 = scmp.ne.s32.totalorder %s116, %s117
    %p126 = scmp.eq.s32.totalorder %s17, 0
    %p127 = por %p125, %p126
    %p128 = scmp.ne.s32.totalorder %s116, %s117
    %p129 = scmp.eq.s32.totalorder %s18, 1
    %p130 = por %p128, %p129
    %p132 = scmp.ne.s32.totalorder %s117, %s131
    %p133 = scmp.eq.s32.totalorder %s18, 0
    %p134 = por %p132, %p133
    %s136 = sadd.s32 %s135, 1
    %p139 = scmp.eq.s32.totalorder %s12, 1
    %p140 = scmp.ne.s32.totalorder %s135, %s137
    %p141 = scmp.eq.s32.totalorder %s12, 0
    %p142 = por %p140, %p141
    %p143 = scmp.ne.s32.totalorder %s135, %s137
    %p144 = scmp.eq.s32.totalorder %s17, 1
    %p145 = por %p143, %p144
    %p146 = scmp.ne.s32.totalorder %s137, %s138
    %p147 = scmp.eq.s32.totalorder %s17, 0
    %p148 = por %p146, %p147
    %p149 = scmp.ne.s32.totalorder %s137, %s138
    %p150 = scmp.eq.s32.totalorder %s18, 1
    %p151 = por %p149, %p150
    %p153 = scmp.ne.s32.totalorder %s138, %s152
    %p154 = scmp.eq.s32.totalorder %s18, 0
    %p155 = por %p153, %p154
    %s156 = ssub.s32 %s12, %s19
    %p157 = scmp.eq.s32.totalorder %s156, 0
    %s159 = sadd.s32 %s158, 1
    %s160 = scalar_select %p157, %s158, %s159
    %p163 = pneg %p157
    %p164 = scmp.eq.s32.totalorder %s12, 1
    %p165 = por %p163, %p164
    %p166 = scmp.ne.s32.totalorder %s158, %s161
    %p167 = scmp.eq.s32.totalorder %s12, 0
    %p168 = por %p166, %p167
    %p169 = scmp.ne.s32.totalorder %s158, %s161
    %p170 = scmp.eq.s32.totalorder %s17, 1
    %p171 = por %p169, %p170
    %p172 = scmp.ne.s32.totalorder %s161, %s162
    %p173 = scmp.eq.s32.totalorder %s17, 0
    %p174 = por %p172, %p173
    %p175 = scmp.ne.s32.totalorder %s161, %s162
    %p176 = scmp.eq.s32.totalorder %s18, 1
    %p177 = por %p175, %p176
    %p179 = scmp.ne.s32.totalorder %s162, %s178
    %p180 = scmp.eq.s32.totalorder %s18, 0
    %p181 = por %p179, %p180
    %p182 = scmp.le.s32.totalorder 1, %s12
    %p183 = scmp.lt.s32.totalorder %s12, 3
    %p184 = pnand %p182, %p183
    %p185 = pneg %p184
    // Predicated region
    $region9: #{basic_block_forward.7} parent=5 // pred_check
      _
    $region10: #{basic_block_forward.7} parent=5 // pred_check_branch
      %187 = sbr.rel (%p184) target = $region12
    $region11: #{basic_block_forward.7} parent=5 // pred_region
      %s188 = ssub.s32 %s12, 1
      // Predicated region
      $region13: #{basic_block_forward.7} parent=11 // pred_check
        %p189 = pneg %p59
      $region14: #{basic_block_forward.7} parent=11 // pred_check_branch
        %191 = sbr.rel (%p189) target = $region16
      $region15: #{basic_block_forward.7} parent=11 // pred_region
        _
      $region16: #{basic_block_forward.7} parent=11 // pred_fallthru
        _
      // Predicated region
      $region17: #{basic_block_forward.7} parent=11 // pred_check
        %p192 = pneg %p80
      $region18: #{basic_block_forward.7} parent=11 // pred_check_branch
        %194 = sbr.rel (%p192) target = $region20
      $region19: #{basic_block_forward.7} parent=11 // pred_region
        _
      $region20: #{basic_block_forward.7} parent=11 // pred_fallthru
        _
      // Predicated region
      $region21: #{basic_block_forward.7} parent=11 // pred_check
        %p195 = pneg %p127
      $region22: #{basic_block_forward.7} parent=11 // pred_check_branch
        %197 = sbr.rel (%p195) target = $region24
      $region23: #{basic_block_forward.7} parent=11 // pred_region
        _
      $region24: #{basic_block_forward.7} parent=11 // pred_fallthru
        _
      // Predicated region
      $region25: #{basic_block_forward.7} parent=11 // pred_check
        %p198 = pneg %p148
      $region26: #{basic_block_forward.7} parent=11 // pred_check_branch
        %200 = sbr.rel (%p198) target = $region28
      $region27: #{basic_block_forward.7} parent=11 // pred_region
        _
      $region28: #{basic_block_forward.7} parent=11 // pred_fallthru
        _
    $region12: #{basic_block_forward.7} parent=5 // pred_fallthru
      _
    %p201 = scmp.lt.s32.totalorder %s12, 2
    // Predicated region
    $region29: #{basic_block_forward.7} parent=5 // pred_check
      %p202 = pneg %p201
    $region30: #{basic_block_forward.7} parent=5 // pred_check_branch
      %204 = sbr.rel (%p202) target = $region32
    $region31: #{basic_block_forward.7} parent=5 // pred_region
      // Predicated region
      $region33: #{basic_block_forward.7} parent=31 // pred_check
        %p205 = pneg %p32
      $region34: #{basic_block_forward.7} parent=31 // pred_check_branch
        %207 = sbr.rel (%p205) target = $region36
      $region35: #{basic_block_forward.7} parent=31 // pred_region
        %s208 = smul.u32 8, %s12
        %p209 = scmp.lt.s32.totalorder %s208, 15
        %s210 = scalar_select %p209, %s208, 15
        %s211 = smul.addr %s210, 8
        %s212 = scalar_lea.vmem %s0, %s211
        %s213 = smul.u32 8, %s12
      $region36: #{basic_block_forward.7} parent=31 // pred_fallthru
        _
      // Predicated region
      $region37: #{basic_block_forward.7} parent=31 // pred_check
        %p214 = pneg %p100
      $region38: #{basic_block_forward.7} parent=31 // pred_check_branch
        %216 = sbr.rel (%p214) target = $region40
      $region39: #{basic_block_forward.7} parent=31 // pred_region
        %s217 = smul.u32 8, %s12
        %p218 = scmp.lt.s32.totalorder %s217, 15
        %s219 = scalar_select %p218, %s217, 15
        %s220 = smul.addr %s219, 8
        %s221 = scalar_lea.vmem %s3, %s220
        %s222 = smul.u32 8, %s12
      $region40: #{basic_block_forward.7} parent=31 // pred_fallthru
        _
    $region32: #{basic_block_forward.7} parent=5 // pred_fallthru
      _
    %p223 = scmp.le.s32.totalorder 1, %s12
    %p224 = scmp.lt.s32.totalorder %s12, 3
    %p225 = pnand %p223, %p224
    %p226 = pneg %p225
    // Predicated region
    $region41: #{basic_block_forward.7} parent=5 // pred_check
      _
    $region42: #{basic_block_forward.7} parent=5 // pred_check_branch
      %228 = sbr.rel (%p225) target = $region44
    $region43: #{basic_block_forward.7} parent=5 // pred_region
      %s229 = ssub.s32 %s12, 1
      %s230 = smul.u32 8, %s17
      %p231 = scmp.lt.s32.totalorder %s230, 15
      %s232 = scalar_select %p231, %s230, 15
      %s233 = smul.addr %s232, 8
      %s234 = scalar_lea.vmem %s0, %s233
      %p235 = pneg %p38
      %p236 = pneg %p35
      %p237 = pneg %p59
      %p238 = pneg %p56
      %p239 = pneg %p80
      %p240 = pneg %p77
      %s241 = smul.u32 8, %s17
      %p242 = scmp.lt.s32.totalorder %s241, 15
      %s243 = scalar_select %p242, %s241, 15
      %s244 = smul.addr %s243, 8
      %s245 = scalar_lea.vmem %s3, %s244
      %p246 = pneg %p106
      %p247 = pneg %p103
      %p248 = pneg %p127
      %p249 = pneg %p124
      %p250 = pneg %p148
      %p251 = pneg %p145
      %p252 = pneg %p174
      %p253 = pneg %p171
      %s254 = smul.u32 8, %s17
      %p255 = scmp.lt.s32.totalorder %s254, 15
      %s256 = scalar_select %p255, %s254, 15
      %s257 = smul.addr %s256, 8
      %s258 = scalar_lea.vmem %s6, %s257
      %s259 = smul.u32 8, %s17
      %p260 = scmp.lt.s32.totalorder %s259, 15
      %s261 = scalar_select %p260, %s259, 15
      %s262 = smul.addr %s261, 8
      %s263 = scalar_lea.vmem %s0, %s262
      %s264 = smul.u32 8, %s17
      %s265 = smul.u32 8, %s17
      %p266 = scmp.lt.s32.totalorder %s265, 15
      %s267 = scalar_select %p266, %s265, 15
      %s268 = smul.addr %s267, 8
      %s269 = scalar_lea.vmem %s3, %s268
      %s270 = smul.u32 8, %s17
      %s271 = smul.u32 8, %s17
      %p272 = scmp.lt.s32.totalorder %s271, 15
      %s273 = scalar_select %p272, %s271, 15
      %s274 = smul.addr %s273, 8
      %s275 = scalar_lea.vmem %s6, %s274
      %s276 = smul.u32 8, %s17
      %v277 = vld [vmem:[%s263] sm:$0xff]
      %v278 = vld [vmem:[%s263 + $0x8] sm:$0xff]
      %v279 = vld [vmem:[%s263 + $0x10] sm:$0xff]
      %v280 = vld [vmem:[%s263 + $0x18] sm:$0xff]
      %v281 = vld [vmem:[%s263 + $0x20] sm:$0xff]
      %v282 = vld [vmem:[%s263 + $0x28] sm:$0xff]
      %v283 = vld [vmem:[%s263 + $0x30] sm:$0xff]
      %v284 = vld [vmem:[%s263 + $0x38] sm:$0xff]
      %v285 = vld [vmem:[%s1] sm:$0x1]
      %v287 = vlaneseq
      %v288 = vshrl.u32 %v287, 7
      %v289 = vsub.s32 0, %v288
      %v290 = vrot.slane %v285, %v289
      %v292 = vmul.f32 %v277, %v290
      %v293 = vmul.f32 %v278, %v290
      %v294 = vmul.f32 %v279, %v290
      %v295 = vmul.f32 %v280, %v290
      %v296 = vmul.f32 %v281, %v290
      %v297 = vmul.f32 %v282, %v290
      %v298 = vmul.f32 %v283, %v290
      %v299 = vmul.f32 %v284, %v290
      %v300 = vld [vmem:[%s2] sm:$0x1]
      %v302 = vlaneseq
      %v303 = vshrl.u32 %v302, 7
      %v304 = vsub.s32 0, %v303
      %v305 = vrot.slane %v300, %v304
      %v307 = vadd.f32 %v292, %v305
      %v308 = vadd.f32 %v293, %v305
      %v309 = vadd.f32 %v294, %v305
      %v310 = vadd.f32 %v295, %v305
      %v311 = vadd.f32 %v296, %v305
      %v312 = vadd.f32 %v297, %v305
      %v313 = vadd.f32 %v298, %v305
      %v314 = vadd.f32 %v299, %v305
      %v315 = vld [vmem:[%s269] sm:$0xff]
      %v316 = vld [vmem:[%s269 + $0x8] sm:$0xff]
      %v317 = vld [vmem:[%s269 + $0x10] sm:$0xff]
      %v318 = vld [vmem:[%s269 + $0x18] sm:$0xff]
      %v319 = vld [vmem:[%s269 + $0x20] sm:$0xff]
      %v320 = vld [vmem:[%s269 + $0x28] sm:$0xff]
      %v321 = vld [vmem:[%s269 + $0x30] sm:$0xff]
      %v322 = vld [vmem:[%s269 + $0x38] sm:$0xff]
      %v323 = vld [vmem:[%s4] sm:$0x1]
      %v325 = vlaneseq
      %v326 = vshrl.u32 %v325, 7
      %v327 = vsub.s32 0, %v326
      %v328 = vrot.slane %v323, %v327
      %v330 = vmul.f32 %v315, %v328
      %v331 = vmul.f32 %v316, %v328
      %v332 = vmul.f32 %v317, %v328
      %v333 = vmul.f32 %v318, %v328
      %v334 = vmul.f32 %v319, %v328
      %v335 = vmul.f32 %v320, %v328
      %v336 = vmul.f32 %v321, %v328
      %v337 = vmul.f32 %v322, %v328
      %v338 = vld [vmem:[%s5] sm:$0x1]
      %v340 = vlaneseq
      %v341 = vshrl.u32 %v340, 7
      %v342 = vsub.s32 0, %v341
      %v343 = vrot.slane %v338, %v342
      %v345 = vadd.f32 %v330, %v343
      %v346 = vadd.f32 %v331, %v343
      %v347 = vadd.f32 %v332, %v343
      %v348 = vadd.f32 %v333, %v343
      %v349 = vadd.f32 %v334, %v343
      %v350 = vadd.f32 %v335, %v343
      %v351 = vadd.f32 %v336, %v343
      %v352 = vadd.f32 %v337, %v343
      %v353 = vadd.f32 %v307, %v345
      %v354 = vadd.f32 %v308, %v346
      %v355 = vadd.f32 %v309, %v347
      %v356 = vadd.f32 %v310, %v348
      %v357 = vadd.f32 %v311, %v349
      %v358 = vadd.f32 %v312, %v350
      %v359 = vadd.f32 %v313, %v351
      %v360 = vadd.f32 %v314, %v352
      %v361 = vmax.f32 %v353, 0.0
      %v362 = vmax.f32 %v354, 0.0
      %v363 = vmax.f32 %v355, 0.0
      %v364 = vmax.f32 %v356, 0.0
      %v365 = vmax.f32 %v357, 0.0
      %v366 = vmax.f32 %v358, 0.0
      %v367 = vmax.f32 %v359, 0.0
      %v368 = vmax.f32 %v360, 0.0
      %369 = vst [vmem:[%s275] sm:$0xff] %v361
      %370 = vst [vmem:[%s275 + $0x8] sm:$0xff] %v362
      %371 = vst [vmem:[%s275 + $0x10] sm:$0xff] %v363
      %372 = vst [vmem:[%s275 + $0x18] sm:$0xff] %v364
      %373 = vst [vmem:[%s275 + $0x20] sm:$0xff] %v365
      %374 = vst [vmem:[%s275 + $0x28] sm:$0xff] %v366
      %375 = vst [vmem:[%s275 + $0x30] sm:$0xff] %v367
      %376 = vst [vmem:[%s275 + $0x38] sm:$0xff] %v368
      %s377 = smul.u32 8, %s17
      %p378 = scmp.lt.s32.totalorder %s377, 15
      %s379 = scalar_select %p378, %s377, 15
      %s380 = smul.addr %s379, 8
      %s381 = scalar_lea.vmem %s6, %s380
      // Predicated region
      $region45: #{basic_block_forward.7} parent=43 // pred_check
        %p382 = pneg %p171
      $region46: #{basic_block_forward.7} parent=43 // pred_check_branch
        %384 = sbr.rel (%p382) target = $region48
      $region47: #{basic_block_forward.7} parent=43 // pred_region
        %s385 = smul.u32 8, %s17
      $region48: #{basic_block_forward.7} parent=43 // pred_fallthru
        _
    $region44: #{basic_block_forward.7} parent=5 // pred_fallthru
      _
    %p386 = scmp.le.s32.totalorder 2, %s12
    // Predicated region
    $region49: #{basic_block_forward.7} parent=5 // pred_check
      %p387 = pneg %p386
    $region50: #{basic_block_forward.7} parent=5 // pred_check_branch
      %389 = sbr.rel (%p387) target = $region52
    $region51: #{basic_block_forward.7} parent=5 // pred_region
      %s390 = ssub.s32 %s12, 2
      // Predicated region
      $region53: #{basic_block_forward.7} parent=51 // pred_check
        %p391 = pneg %p177
      $region54: #{basic_block_forward.7} parent=51 // pred_check_branch
        %393 = sbr.rel (%p391) target = $region56
      $region55: #{basic_block_forward.7} parent=51 // pred_region
        %s394 = smul.u32 8, %s18
        %p395 = scmp.lt.s32.totalorder %s394, 15
        %s396 = scalar_select %p395, %s394, 15
        %s397 = smul.addr %s396, 8
        %s398 = scalar_lea.vmem %s6, %s397
      $region56: #{basic_block_forward.7} parent=51 // pred_fallthru
        _
    $region52: #{basic_block_forward.7} parent=5 // pred_fallthru
      _
  $region6: #{basic_block_forward.7} parent=0 // loop_footer
    %s16 = sadd.s32 1, %s12
  $region7: #{basic_block_forward.7} parent=0 // loop_footer_branch
    %11 = sbr.rel target = $region3
  $region8: #{basic_block_forward.7} parent=0 // loop_exit
    _

</llo_original>
